<compile_context>
chip_gen: v7x
topology: tpu7x:2x2x1
jax: 0.10.0
libtpu: 0.0.40
codegen_flags: <defaults>
</compile_context>

<pallas_src>
import math
import functools

import jax
import jax.numpy as jnp
from jax.experimental import pallas as pl
from jax.experimental.pallas import tpu as pltpu


# ------------------------------------------------------------------ in-kernel helpers

def _layernorm(x, g, b):
    mu = jnp.mean(x, axis=-1, keepdims=True)
    xc = x - mu
    var = jnp.mean(xc * xc, axis=-1, keepdims=True)            # biased var (PyTorch LN)
    return xc * jax.lax.rsqrt(var + 1e-5) * g + b


def _softmax_rows(s):
    s = s - jnp.max(s, axis=-1, keepdims=True)
    p = jnp.exp(s)
    return p / jnp.sum(p, axis=-1, keepdims=True)               # exact (parity-safe)


def _gelu(x):
    return 0.5 * x * (1.0 + jax.lax.erf(x * (1.0 / math.sqrt(2.0))))


# ------------------------------------------------------------------ Pallas kernels

def _encoder_layer_kernel(x_ref, *rest, B, N, heads, dim_head, outer):
    """One full Transformer layer (PreNorm(Attn)+res, PreNorm(FFN)+res) on a
    flattened (B*N, D) slab in a single grid step.  `outer` folds the
    MultiScaleEncoder residual into the last layer: "none" | "x" | "extra"."""
    if outer == "extra":
        (x0_ref, ln1g, ln1b, wqkv, wo_r, bo, ln2g, ln2b,
         w1, b1, w2, b2, o_ref) = rest
    else:
        (ln1g, ln1b, wqkv, wo_r, bo, ln2g, ln2b,
         w1, b1, w2, b2, o_ref) = rest
        x0_ref = None

    inner = heads * dim_head
    x = x_ref[...]                                              # (M, D) f32, M = B*N
    xn = _layernorm(x, ln1g[...], ln1b[...])
    # fused QKV on the MXU in bf16 (q columns pre-scaled by dim_head**-0.5 at init)
    qkv = jnp.dot(xn.astype(jnp.bfloat16), wqkv[...],
                  preferred_element_type=jnp.float32)           # (M, 3*inner) f32 acc
    qkv_b = qkv.astype(jnp.bfloat16)
    wo = wo_r[...]                                              # (inner, D) bf16

    # per-(batch, head) score/softmax/PV; per-head accumulation through wo row slices
    # (no lane-axis head concat).  Attention partials are stashed in the output block.
    for b in range(B):
        r0 = b * N
        y_b = None
        for h in range(heads):
            c = h * dim_head
            qh = qkv_b[r0:r0 + N, c:c + dim_head]                           # (N, dh)
            kh = qkv_b[r0:r0 + N, inner + c:inner + c + dim_head]           # (N, dh)
            vh = qkv_b[r0:r0 + N, 2 * inner + c:2 * inner + c + dim_head]   # (N, dh)
            s = jax.lax.dot_general(qh, kh, (((1,), (1,)), ((), ())),
                                    preferred_element_type=jnp.float32)     # (N, N)
            p = _softmax_rows(s).astype(jnp.bfloat16)
            oh = jnp.dot(p, vh, preferred_element_type=jnp.float32)         # (N, dh)
            yh = jnp.dot(oh.astype(jnp.bfloat16), wo[c:c + dim_head, :],
                         preferred_element_type=jnp.float32)                # (N, D)
            y_b = yh if y_b is None else y_b + yh
        o_ref[pl.ds(r0, N), :] = y_b

    # attention epilogue + FFN over the whole flattened slab (M = B*N rows on the MXU)
    ax = o_ref[...] + bo[...] + x                               # to_out bias + residual
    h1 = jnp.dot(_layernorm(ax, ln2g[...], ln2b[...]).astype(jnp.bfloat16),
                 w1[...], preferred_element_type=jnp.float32) + b1[...]
    h1 = _gelu(h1)                                              # exact erf-GELU (f32)
    y = jnp.dot(h1.astype(jnp.bfloat16), w2[...],
                preferred_element_type=jnp.float32) + b2[...]
    out = y + ax
    if outer == "x":                                            # outer residual == layer input
        out = out + x
    elif outer == "extra":                                      # outer residual differs (depth>1)
        out = out + x0_ref[...]
    o_ref[...] = out


def _cross_kernel(cls_ref, ctx_ref, *rest, B, N_ctx, heads, dim_head, need_proj):
    """ProjectInOut(PreNorm(CrossAttention)) with kv_include_self + residual, all B
    batch elements in a single grid step.  q only from the B projected cls rows."""
    if need_proj:
        (pin_w, pin_b, ln_g, ln_b, wq, wkv, wo_r, bo,
         pout_w, pout_b, o_ref, slab, y_scr) = rest
    else:
        (ln_g, ln_b, wq, wkv, wo_r, bo, o_ref, slab, y_scr) = rest

    inner = heads * dim_head
    S = 1 + N_ctx
    cls_all = cls_ref[...]                                      # (B, D_out) f32

    if need_proj:                                               # project_in (skipped when dims match)
        x_all = jnp.dot(cls_all.astype(jnp.bfloat16), pin_w[...],
                        preferred_element_type=jnp.float32) + pin_b[...]
    else:
        x_all = cls_all                                         # nn.Identity

    ctx = ctx_ref[...]                                          # (B*N_ctx, D_in) f32
    # kv_include_self: build [projected cls_b ; context_b] per batch with aligned
    # row stores into a VMEM scratch slab (no in-kernel concatenate copy).
    for b in range(B):
        slab[pl.ds(b * S, 1), :] = x_all[b:b + 1, :]
        slab[pl.ds(b * S + 1, N_ctx), :] = ctx[b * N_ctx:(b + 1) * N_ctx, :]

    xn_slab = _layernorm(slab[...], ln_g[...], ln_b[...])       # (B*S, D_in)
    kv = jnp.dot(xn_slab.astype(jnp.bfloat16), wkv[...],
                 preferred_element_type=jnp.float32)            # (B*S, 2*inner)
    xn_cls = _layernorm(x_all, ln_g[...], ln_b[...])            # (B, D_in)
    q_all = jnp.dot(xn_cls.astype(jnp.bfloat16), wq[...],
                    preferred_element_type=jnp.float32)         # (B, inner), pre-scaled q

    kv_b = kv.astype(jnp.bfloat16)
    q_b = q_all.astype(jnp.bfloat16)
    wo = wo_r[...]                                              # (inner, D_in) bf16

    for b in range(B):
        y_b = None
        for h in range(heads):
            c = h * dim_head
            qh = q_b[b:b + 1, c:c + dim_head]                               # (1, dh)
            kh = kv_b[b * S:(b + 1) * S, c:c + dim_head]                    # (S, dh)
            vh = kv_b[b * S:(b + 1) * S, inner + c:inner + c + dim_head]    # (S, dh)
            s = jax.lax.dot_general(qh, kh, (((1,), (1,)), ((), ())),
                                    preferred_element_type=jnp.float32)     # (1, S)
            p = _softmax_rows(s).astype(jnp.bfloat16)
            oh = jnp.dot(p, vh, preferred_element_type=jnp.float32)         # (1, dh)
            yh = jnp.dot(oh.astype(jnp.bfloat16), wo[c:c + dim_head, :],
                         preferred_element_type=jnp.float32)                # (1, D_in)
            y_b = yh if y_b is None else y_b + yh
        y_scr[pl.ds(b, 1), :] = y_b

    y = y_scr[...] + bo[...]                                    # to_out bias, (B, D_in)
    if need_proj:                                               # project_out (skipped when dims match)
        out = jnp.dot(y.astype(jnp.bfloat16), pout_w[...],
                      preferred_element_type=jnp.float32) + pout_b[...]
    else:
        out = y
    o_ref[...] = out + cls_all                                  # outer residual (+ cls)


# ------------------------------------------------------------------ pallas_call wrappers

def _full2(a):
    """Whole-array 2-D block with a constant index map."""
    return pl.BlockSpec(a.shape, lambda i: (0, 0))


def encoder_layer(x2, layer, B, N, heads, dim_head, outer="none", x0=None):
    M, D = x2.shape
    kern = functools.partial(_encoder_layer_kernel, B=B, N=N, heads=heads,
                             dim_head=dim_head, outer=outer)
    args = [x2]
    if outer == "extra":
        args.append(x0)
    args += [layer['ln1_g'], layer['ln1_b'], layer['wqkv'], layer['wo'], layer['bo'],
             layer['ln2_g'], layer['ln2_b'], layer['w1'], layer['b1'],
             layer['w2'], layer['b2']]
    return pl.pallas_call(
        kern,
        out_shape=jax.ShapeDtypeStruct((M, D), jnp.float32),
        grid=(1,),
        in_specs=[_full2(a) for a in args],
        out_specs=pl.BlockSpec((M, D), lambda i: (0, 0)),
        compiler_params=pltpu.CompilerParams(dimension_semantics=("arbitrary",)),
    )(*args)


def cross_block(cls_tok, context, p, heads, dim_head):
    B, _, D_out = cls_tok.shape
    _, N_ctx, D_in = context.shape
    S = 1 + N_ctx
    need_proj = bool(p['need_proj'])

    cls2 = cls_tok.reshape(B, D_out)
    ctx2 = context.reshape(B * N_ctx, D_in)

    args = [cls2, ctx2]
    if need_proj:
        args += [p['pin_w'], p['pin_b']]
    args += [p['ln_g'], p['ln_b'], p['wq'], p['wkv'], p['wo'], p['bo']]
    if need_proj:
        args += [p['pout_w'], p['pout_b']]

    kern = functools.partial(_cross_kernel, B=B, N_ctx=N_ctx, heads=heads,
                             dim_head=dim_head, need_proj=need_proj)
    out = pl.pallas_call(
        kern,
        out_shape=jax.ShapeDtypeStruct((B, D_out), jnp.float32),
        grid=(1,),
        in_specs=[_full2(a) for a in args],
        out_specs=pl.BlockSpec((B, D_out), lambda i: (0, 0)),
        scratch_shapes=[pltpu.VMEM((B * S, D_in), jnp.float32),   # [cls;ctx] kv slab
                        pltpu.VMEM((B, D_in), jnp.float32)],      # attention output rows
        compiler_params=pltpu.CompilerParams(dimension_semantics=("arbitrary",)),
    )(*args)
    return out.reshape(B, 1, D_out)


# ------------------------------------------------------------------ model (glue in JAX)

def transformer(x, p, heads, dim_head, outer_residual=None):
    """Transformer(x) (+ outer_residual, folded into the last layer's kernel)."""
    B, N, D = x.shape
    x2 = x.reshape(B * N, D)
    x0 = None
    if outer_residual is not None:
        x0 = x2 if outer_residual is x else outer_residual.reshape(B * N, D)
    n_layers = len(p['layers'])
    for li, layer in enumerate(p['layers']):
        last = (li == n_layers - 1)
        if last and x0 is not None:
            mode = "x" if x0 is x2 else "extra"
            x2 = encoder_layer(x2, layer, B, N, heads, dim_head, outer=mode,
                               x0=None if mode == "x" else x0)
        else:
            x2 = encoder_layer(x2, layer, B, N, heads, dim_head)
    return x2.reshape(B, N, D)


def cross_transformer(sm_tokens, lg_tokens, p, heads, dim_head):
    sm_cls, sm_patch = sm_tokens[:, :1], sm_tokens[:, 1:]
    lg_cls, lg_patch = lg_tokens[:, :1], lg_tokens[:, 1:]
    for layer in p['layers']:
        sm_cls = cross_block(sm_cls, lg_tokens, layer['sm_attend_lg'], heads, dim_head)
        # TODO(synk): the skeleton literally passes lg_tokens as the lg branch's context,
        # which is a dim mismatch / TypeError in PyTorch when sm_dim != lg_dim; we follow
        # the CrossViT intent of lg_attend_sm and pass sm_tokens.
        lg_cls = cross_block(lg_cls, sm_tokens, layer['lg_attend_sm'], heads, dim_head)
    sm_tokens = jnp.concatenate([sm_cls, sm_patch], axis=1)
    lg_tokens = jnp.concatenate([lg_cls, lg_patch], axis=1)
    return sm_tokens, lg_tokens


def multi_scale_encoder(sm_tokens, lg_tokens, params, cfg):
    for layer in params['layers']:
        # sm_tokens + Transformer(sm_tokens): outer residual folded into the last kernel
        sm_tokens = transformer(sm_tokens, layer['sm_enc'], cfg['sm_heads'],
                                cfg['sm_dim_head'], outer_residual=sm_tokens)
        lg_tokens = transformer(lg_tokens, layer['lg_enc'], cfg['lg_heads'],
                                cfg['lg_dim_head'], outer_residual=lg_tokens)
        sm_tokens, lg_tokens = cross_transformer(sm_tokens, lg_tokens, layer['cross'],
                                                 cfg['cross_heads'], cfg['cross_dim_head'])
    return sm_tokens, lg_tokens


# ------------------------------------------------------------------ deterministic init

class KeyGen:
    def __init__(self, key):
        self.key = key

    def __call__(self):
        self.key, sub = jax.random.split(self.key)
        return sub


def _w(kg, shape, scale=0.02):
    return jax.random.normal(kg(), shape, jnp.float32) * scale


def _qkv_weights(kg, dim, heads, dim_head):
    inner = heads * dim_head
    # Pre-scale the q projection by dim_head**-0.5 at init so the kernels never
    # multiply the score matrix by `scale` (numerically identical in exact arithmetic).
    wq = _w(kg, (dim, inner)) * (dim_head ** -0.5)
    wk = _w(kg, (dim, inner))
    wv = _w(kg, (dim, inner))
    return wq, wk, wv


def init_transformer(kg, dim, depth, heads, dim_head, mlp_dim):
    inner = heads * dim_head
    layers = []
    for _ in range(depth):
        wq, wk, wv = _qkv_weights(kg, dim, heads, dim_head)
        layers.append(dict(
            ln1_g=jnp.ones((1, dim), jnp.float32), ln1_b=jnp.zeros((1, dim), jnp.float32),
            wqkv=jnp.concatenate([wq, wk, wv], axis=1).astype(jnp.bfloat16),
            wo=_w(kg, (inner, dim)).astype(jnp.bfloat16),
            bo=jnp.zeros((1, dim), jnp.float32),
            ln2_g=jnp.ones((1, dim), jnp.float32), ln2_b=jnp.zeros((1, dim), jnp.float32),
            w1=_w(kg, (dim, mlp_dim)).astype(jnp.bfloat16),
            b1=jnp.zeros((1, mlp_dim), jnp.float32),
            w2=_w(kg, (mlp_dim, dim)).astype(jnp.bfloat16),
            b2=jnp.zeros((1, dim), jnp.float32)))
    return dict(layers=layers)


def init_cross_branch(kg, dim_outer, dim_inner, heads, dim_head):
    need = dim_outer != dim_inner
    inner = heads * dim_head
    wq, wk, wv = _qkv_weights(kg, dim_inner, heads, dim_head)
    d = dict(
        need_proj=need,
        ln_g=jnp.ones((1, dim_inner), jnp.float32), ln_b=jnp.zeros((1, dim_inner), jnp.float32),
        wq=wq.astype(jnp.bfloat16),
        wkv=jnp.concatenate([wk, wv], axis=1).astype(jnp.bfloat16),
        wo=_w(kg, (inner, dim_inner)).astype(jnp.bfloat16),
        bo=jnp.zeros((1, dim_inner), jnp.float32))
    if need:   # ProjectInOut is nn.Identity when dims match -> no weights, no matmuls
        d.update(pin_w=_w(kg, (dim_outer, dim_inner)).astype(jnp.bfloat16),
                 pin_b=jnp.zeros((1, dim_inner), jnp.float32),
                 pout_w=_w(kg, (dim_inner, dim_outer)).astype(jnp.bfloat16),
                 pout_b=jnp.zeros((1, dim_outer), jnp.float32))
    return d


def init_cross_transformer(kg, sm_dim, lg_dim, depth, heads, dim_head):
    layers = []
    for _ in range(depth):
        layers.append(dict(
            sm_attend_lg=init_cross_branch(kg, sm_dim, lg_dim, heads, dim_head),
            lg_attend_sm=init_cross_branch(kg, lg_dim, sm_dim, heads, dim_head)))
    return dict(layers=layers)


def init_multi_scale_encoder(kg, cfg):
    layers = []
    for _ in range(cfg['depth']):
        layers.append(dict(
            sm_enc=init_transformer(kg, cfg['sm_dim'], cfg['sm_depth'], cfg['sm_heads'],
                                    cfg['sm_dim_head'], cfg['sm_mlp_dim']),
            lg_enc=init_transformer(kg, cfg['lg_dim'], cfg['lg_depth'], cfg['lg_heads'],
                                    cfg['lg_dim_head'], cfg['lg_mlp_dim']),
            cross=init_cross_transformer(kg, cfg['sm_dim'], cfg['lg_dim'], cfg['cross_depth'],
                                         cfg['cross_heads'], cfg['cross_dim_head'])))
    return dict(layers=layers)


# ------------------------------------------------------------------ main

if __name__ == "__main__":
    cfg = dict(
        depth=1,
        sm_dim=32, lg_dim=64,
        sm_depth=1, sm_heads=2, sm_dim_head=16, sm_mlp_dim=64,
        lg_depth=1, lg_heads=2, lg_dim_head=16, lg_mlp_dim=128,
        cross_depth=1, cross_heads=2, cross_dim_head=16,
    )
    key = jax.random.PRNGKey(0)
    k_params, k_sm, k_lg = jax.random.split(key, 3)
    params = init_multi_scale_encoder(KeyGen(k_params), cfg)

    B, N_sm, N_lg = 2, 9, 5          # 1 cls + 8 small patches, 1 cls + 4 large patches
    sm_tokens = jax.random.normal(k_sm, (B, N_sm, cfg['sm_dim']), jnp.float32)
    lg_tokens = jax.random.normal(k_lg, (B, N_lg, cfg['lg_dim']), jnp.float32)

    sm_out, lg_out = multi_scale_encoder(sm_tokens, lg_tokens, params, cfg)
    jax.block_until_ready((sm_out, lg_out))

    assert sm_out.shape == (B, N_sm, cfg['sm_dim'])
    assert lg_out.shape == (B, N_lg, cfg['lg_dim'])
    assert bool(jnp.all(jnp.isfinite(sm_out))) and bool(jnp.all(jnp.isfinite(lg_out)))
    print("KERNEL_OK")
</pallas_src>

<mosaic_0001>
module attributes {stable_mosaic.version = 11 : i64} {
  func.func @_encoder_layer_kernel(%arg0: i32, %arg1: memref<18x32xf32, #tpu.memory_space<vmem>>, %arg2: memref<1x32xf32, #tpu.memory_space<vmem>>, %arg3: memref<1x32xf32, #tpu.memory_space<vmem>>, %arg4: memref<32x96xbf16, #tpu.memory_space<vmem>>, %arg5: memref<32x32xbf16, #tpu.memory_space<vmem>>, %arg6: memref<1x32xf32, #tpu.memory_space<vmem>>, %arg7: memref<1x32xf32, #tpu.memory_space<vmem>>, %arg8: memref<1x32xf32, #tpu.memory_space<vmem>>, %arg9: memref<32x64xbf16, #tpu.memory_space<vmem>>, %arg10: memref<1x64xf32, #tpu.memory_space<vmem>>, %arg11: memref<64x32xbf16, #tpu.memory_space<vmem>>, %arg12: memref<1x32xf32, #tpu.memory_space<vmem>>, %arg13: memref<18x32xf32, #tpu.memory_space<vmem>>) attributes {dimension_semantics = [#tpu.dimension_semantics<arbitrary>], iteration_bounds = array<i64: 1>, scalar_prefetch = 0 : i64, scratch_operands = 0 : i64, tpu.core_type = #tpu.core_type<tc>, window_params = [{pipeline_mode = #tpu.pipeline_mode<synchronous>, transform_indices = @transform_0, window_bounds = array<i64: 18, 32>}, {pipeline_mode = #tpu.pipeline_mode<synchronous>, transform_indices = @transform_1, window_bounds = array<i64: 1, 32>}, {pipeline_mode = #tpu.pipeline_mode<synchronous>, transform_indices = @transform_2, window_bounds = array<i64: 1, 32>}, {pipeline_mode = #tpu.pipeline_mode<synchronous>, transform_indices = @transform_3, window_bounds = array<i64: 32, 96>}, {pipeline_mode = #tpu.pipeline_mode<synchronous>, transform_indices = @transform_4, window_bounds = array<i64: 32, 32>}, {pipeline_mode = #tpu.pipeline_mode<synchronous>, transform_indices = @transform_5, window_bounds = array<i64: 1, 32>}, {pipeline_mode = #tpu.pipeline_mode<synchronous>, transform_indices = @transform_6, window_bounds = array<i64: 1, 32>}, {pipeline_mode = #tpu.pipeline_mode<synchronous>, transform_indices = @transform_7, window_bounds = array<i64: 1, 32>}, {pipeline_mode = #tpu.pipeline_mode<synchronous>, transform_indices = @transform_8, window_bounds = array<i64: 32, 64>}, {pipeline_mode = #tpu.pipeline_mode<synchronous>, transform_indices = @transform_9, window_bounds = array<i64: 1, 64>}, {pipeline_mode = #tpu.pipeline_mode<synchronous>, transform_indices = @transform_10, window_bounds = array<i64: 64, 32>}, {pipeline_mode = #tpu.pipeline_mode<synchronous>, transform_indices = @transform_11, window_bounds = array<i64: 1, 32>}, {pipeline_mode = #tpu.pipeline_mode<synchronous>, transform_indices = @transform_12, window_bounds = array<i64: 18, 32>}]} {
    %c0 = arith.constant 0 : index
    %c0_0 = arith.constant 0 : index
    %0 = vector.load %arg1[%c0, %c0_0] : memref<18x32xf32, #tpu.memory_space<vmem>>, vector<18x32xf32>
    %c0_1 = arith.constant 0 : index
    %c0_2 = arith.constant 0 : index
    %1 = vector.load %arg2[%c0_1, %c0_2] : memref<1x32xf32, #tpu.memory_space<vmem>>, vector<1x32xf32>
    %c0_3 = arith.constant 0 : index
    %c0_4 = arith.constant 0 : index
    %2 = vector.load %arg3[%c0_3, %c0_4] : memref<1x32xf32, #tpu.memory_space<vmem>>, vector<1x32xf32>
    %cst = arith.constant dense<0.000000e+00> : vector<18xf32>
    %3 = vector.multi_reduction <add>, %0, %cst [1] : vector<18x32xf32> to vector<18xf32>
    %4 = vector.shape_cast %3 : vector<18xf32> to vector<18x1xf32>
    %cst_5 = arith.constant 3.200000e+01 : f32
    %5 = vector.broadcast %cst_5 : f32 to vector<18x1xf32>
    %6 = arith.divf %4, %5 : vector<18x1xf32>
    %7 = vector.broadcast %6 : vector<18x1xf32> to vector<18x32xf32>
    %8 = arith.subf %0, %7 : vector<18x32xf32>
    %9 = arith.mulf %8, %8 : vector<18x32xf32>
    %cst_6 = arith.constant dense<0.000000e+00> : vector<18xf32>
    %10 = vector.multi_reduction <add>, %9, %cst_6 [1] : vector<18x32xf32> to vector<18xf32>
    %11 = vector.shape_cast %10 : vector<18xf32> to vector<18x1xf32>
    %cst_7 = arith.constant 3.200000e+01 : f32
    %12 = vector.broadcast %cst_7 : f32 to vector<18x1xf32>
    %13 = arith.divf %11, %12 : vector<18x1xf32>
    %cst_8 = arith.constant 9.99999974E-6 : f32
    %14 = vector.broadcast %cst_8 : f32 to vector<18x1xf32>
    %15 = arith.addf %13, %14 : vector<18x1xf32>
    %16 = math.rsqrt %15 : vector<18x1xf32>
    %17 = vector.broadcast %16 : vector<18x1xf32> to vector<18x32xf32>
    %18 = arith.mulf %8, %17 : vector<18x32xf32>
    %19 = vector.broadcast %1 : vector<1x32xf32> to vector<18x32xf32>
    %20 = arith.mulf %18, %19 : vector<18x32xf32>
    %21 = vector.broadcast %2 : vector<1x32xf32> to vector<18x32xf32>
    %22 = arith.addf %20, %21 : vector<18x32xf32>
    %23 = arith.truncf %22 : vector<18x32xf32> to vector<18x32xbf16>
    %c0_9 = arith.constant 0 : index
    %c0_10 = arith.constant 0 : index
    %24 = vector.load %arg4[%c0_9, %c0_10] : memref<32x96xbf16, #tpu.memory_space<vmem>>, vector<32x96xbf16>
    %cst_11 = arith.constant dense<0.000000e+00> : vector<18x96xf32>
    %25 = tpu.matmul %23, %24, %cst_11 {dimension_numbers = #tpu.dot_dimension_numbers<[1], [0], [0], [1], [0, 0, 1, 1], [], []>} : vector<18x32xbf16>, vector<32x96xbf16>, vector<18x96xf32> -> vector<18x96xf32>
    %26 = arith.truncf %25 : vector<18x96xf32> to vector<18x96xbf16>
    %c0_12 = arith.constant 0 : index
    %c0_13 = arith.constant 0 : index
    %27 = vector.load %arg5[%c0_12, %c0_13] : memref<32x32xbf16, #tpu.memory_space<vmem>>, vector<32x32xbf16>
    %28 = vector.extract_strided_slice %26 {offsets = [0, 0], sizes = [9, 16], strides = [1, 1]} : vector<18x96xbf16> to vector<9x16xbf16>
    %29 = vector.extract_strided_slice %26 {offsets = [0, 32], sizes = [9, 16], strides = [1, 1]} : vector<18x96xbf16> to vector<9x16xbf16>
    %30 = vector.extract_strided_slice %26 {offsets = [0, 64], sizes = [9, 16], strides = [1, 1]} : vector<18x96xbf16> to vector<9x16xbf16>
    %cst_14 = arith.constant dense<0.000000e+00> : vector<9x9xf32>
    %31 = tpu.matmul %28, %29, %cst_14 {dimension_numbers = #tpu.dot_dimension_numbers<[1], [1], [0], [0], [0, 0, 1, 0], [], []>} : vector<9x16xbf16>, vector<9x16xbf16>, vector<9x9xf32> -> vector<9x9xf32>
    %cst_15 = arith.constant dense<0xFF800000> : vector<9xf32>
    %32 = vector.multi_reduction <maximumf>, %31, %cst_15 [1] : vector<9x9xf32> to vector<9xf32>
    %33 = vector.shape_cast %32 : vector<9xf32> to vector<9x1xf32>
    %34 = vector.broadcast %33 : vector<9x1xf32> to vector<9x9xf32>
    %35 = arith.subf %31, %34 : vector<9x9xf32>
    %36 = math.exp %35 : vector<9x9xf32>
    %cst_16 = arith.constant dense<0.000000e+00> : vector<9xf32>
    %37 = vector.multi_reduction <add>, %36, %cst_16 [1] : vector<9x9xf32> to vector<9xf32>
    %38 = vector.shape_cast %37 : vector<9xf32> to vector<9x1xf32>
    %39 = vector.broadcast %38 : vector<9x1xf32> to vector<9x9xf32>
    %40 = arith.divf %36, %39 : vector<9x9xf32>
    %41 = arith.truncf %40 : vector<9x9xf32> to vector<9x9xbf16>
    %cst_17 = arith.constant dense<0.000000e+00> : vector<9x16xf32>
    %42 = tpu.matmul %41, %30, %cst_17 {dimension_numbers = #tpu.dot_dimension_numbers<[1], [0], [0], [1], [0, 0, 1, 1], [], []>} : vector<9x9xbf16>, vector<9x16xbf16>, vector<9x16xf32> -> vector<9x16xf32>
    %43 = arith.truncf %42 : vector<9x16xf32> to vector<9x16xbf16>
    %44 = vector.extract_strided_slice %27 {offsets = [0, 0], sizes = [16, 32], strides = [1, 1]} : vector<32x32xbf16> to vector<16x32xbf16>
    %cst_18 = arith.constant dense<0.000000e+00> : vector<9x32xf32>
    %45 = tpu.matmul %43, %44, %cst_18 {dimension_numbers = #tpu.dot_dimension_numbers<[1], [0], [0], [1], [0, 0, 1, 1], [], []>} : vector<9x16xbf16>, vector<16x32xbf16>, vector<9x32xf32> -> vector<9x32xf32>
    %46 = vector.extract_strided_slice %26 {offsets = [0, 16], sizes = [9, 16], strides = [1, 1]} : vector<18x96xbf16> to vector<9x16xbf16>
    %47 = vector.extract_strided_slice %26 {offsets = [0, 48], sizes = [9, 16], strides = [1, 1]} : vector<18x96xbf16> to vector<9x16xbf16>
    %48 = vector.extract_strided_slice %26 {offsets = [0, 80], sizes = [9, 16], strides = [1, 1]} : vector<18x96xbf16> to vector<9x16xbf16>
    %cst_19 = arith.constant dense<0.000000e+00> : vector<9x9xf32>
    %49 = tpu.matmul %46, %47, %cst_19 {dimension_numbers = #tpu.dot_dimension_numbers<[1], [1], [0], [0], [0, 0, 1, 0], [], []>} : vector<9x16xbf16>, vector<9x16xbf16>, vector<9x9xf32> -> vector<9x9xf32>
    %cst_20 = arith.constant dense<0xFF800000> : vector<9xf32>
    %50 = vector.multi_reduction <maximumf>, %49, %cst_20 [1] : vector<9x9xf32> to vector<9xf32>
    %51 = vector.shape_cast %50 : vector<9xf32> to vector<9x1xf32>
    %52 = vector.broadcast %51 : vector<9x1xf32> to vector<9x9xf32>
    %53 = arith.subf %49, %52 : vector<9x9xf32>
    %54 = math.exp %53 : vector<9x9xf32>
    %cst_21 = arith.constant dense<0.000000e+00> : vector<9xf32>
    %55 = vector.multi_reduction <add>, %54, %cst_21 [1] : vector<9x9xf32> to vector<9xf32>
    %56 = vector.shape_cast %55 : vector<9xf32> to vector<9x1xf32>
    %57 = vector.broadcast %56 : vector<9x1xf32> to vector<9x9xf32>
    %58 = arith.divf %54, %57 : vector<9x9xf32>
    %59 = arith.truncf %58 : vector<9x9xf32> to vector<9x9xbf16>
    %cst_22 = arith.constant dense<0.000000e+00> : vector<9x16xf32>
    %60 = tpu.matmul %59, %48, %cst_22 {dimension_numbers = #tpu.dot_dimension_numbers<[1], [0], [0], [1], [0, 0, 1, 1], [], []>} : vector<9x9xbf16>, vector<9x16xbf16>, vector<9x16xf32> -> vector<9x16xf32>
    %61 = arith.truncf %60 : vector<9x16xf32> to vector<9x16xbf16>
    %62 = vector.extract_strided_slice %27 {offsets = [16, 0], sizes = [16, 32], strides = [1, 1]} : vector<32x32xbf16> to vector<16x32xbf16>
    %cst_23 = arith.constant dense<0.000000e+00> : vector<9x32xf32>
    %63 = tpu.matmul %61, %62, %cst_23 {dimension_numbers = #tpu.dot_dimension_numbers<[1], [0], [0], [1], [0, 0, 1, 1], [], []>} : vector<9x16xbf16>, vector<16x32xbf16>, vector<9x32xf32> -> vector<9x32xf32>
    %64 = arith.addf %45, %63 : vector<9x32xf32>
    %c0_24 = arith.constant 0 : index
    %c0_25 = arith.constant 0 : index
    %65 = vector.load %arg13[%c0_24, %c0_25] : memref<18x32xf32, #tpu.memory_space<vmem>>, vector<9x32xf32>
    tpu.vector_store %arg13[%c0_24, %c0_25], %64 {strides = array<i32>} : memref<18x32xf32, #tpu.memory_space<vmem>>, vector<9x32xf32>,
    %66 = vector.extract_strided_slice %26 {offsets = [9, 0], sizes = [9, 16], strides = [1, 1]} : vector<18x96xbf16> to vector<9x16xbf16>
    %67 = vector.extract_strided_slice %26 {offsets = [9, 32], sizes = [9, 16], strides = [1, 1]} : vector<18x96xbf16> to vector<9x16xbf16>
    %68 = vector.extract_strided_slice %26 {offsets = [9, 64], sizes = [9, 16], strides = [1, 1]} : vector<18x96xbf16> to vector<9x16xbf16>
    %cst_26 = arith.constant dense<0.000000e+00> : vector<9x9xf32>
    %69 = tpu.matmul %66, %67, %cst_26 {dimension_numbers = #tpu.dot_dimension_numbers<[1], [1], [0], [0], [0, 0, 1, 0], [], []>} : vector<9x16xbf16>, vector<9x16xbf16>, vector<9x9xf32> -> vector<9x9xf32>
    %cst_27 = arith.constant dense<0xFF800000> : vector<9xf32>
    %70 = vector.multi_reduction <maximumf>, %69, %cst_27 [1] : vector<9x9xf32> to vector<9xf32>
    %71 = vector.shape_cast %70 : vector<9xf32> to vector<9x1xf32>
    %72 = vector.broadcast %71 : vector<9x1xf32> to vector<9x9xf32>
    %73 = arith.subf %69, %72 : vector<9x9xf32>
    %74 = math.exp %73 : vector<9x9xf32>
    %cst_28 = arith.constant dense<0.000000e+00> : vector<9xf32>
    %75 = vector.multi_reduction <add>, %74, %cst_28 [1] : vector<9x9xf32> to vector<9xf32>
    %76 = vector.shape_cast %75 : vector<9xf32> to vector<9x1xf32>
    %77 = vector.broadcast %76 : vector<9x1xf32> to vector<9x9xf32>
    %78 = arith.divf %74, %77 : vector<9x9xf32>
    %79 = arith.truncf %78 : vector<9x9xf32> to vector<9x9xbf16>
    %cst_29 = arith.constant dense<0.000000e+00> : vector<9x16xf32>
    %80 = tpu.matmul %79, %68, %cst_29 {dimension_numbers = #tpu.dot_dimension_numbers<[1], [0], [0], [1], [0, 0, 1, 1], [], []>} : vector<9x9xbf16>, vector<9x16xbf16>, vector<9x16xf32> -> vector<9x16xf32>
    %81 = arith.truncf %80 : vector<9x16xf32> to vector<9x16xbf16>
    %82 = vector.extract_strided_slice %27 {offsets = [0, 0], sizes = [16, 32], strides = [1, 1]} : vector<32x32xbf16> to vector<16x32xbf16>
    %cst_30 = arith.constant dense<0.000000e+00> : vector<9x32xf32>
    %83 = tpu.matmul %81, %82, %cst_30 {dimension_numbers = #tpu.dot_dimension_numbers<[1], [0], [0], [1], [0, 0, 1, 1], [], []>} : vector<9x16xbf16>, vector<16x32xbf16>, vector<9x32xf32> -> vector<9x32xf32>
    %84 = vector.extract_strided_slice %26 {offsets = [9, 16], sizes = [9, 16], strides = [1, 1]} : vector<18x96xbf16> to vector<9x16xbf16>
    %85 = vector.extract_strided_slice %26 {offsets = [9, 48], sizes = [9, 16], strides = [1, 1]} : vector<18x96xbf16> to vector<9x16xbf16>
    %86 = vector.extract_strided_slice %26 {offsets = [9, 80], sizes = [9, 16], strides = [1, 1]} : vector<18x96xbf16> to vector<9x16xbf16>
    %cst_31 = arith.constant dense<0.000000e+00> : vector<9x9xf32>
    %87 = tpu.matmul %84, %85, %cst_31 {dimension_numbers = #tpu.dot_dimension_numbers<[1], [1], [0], [0], [0, 0, 1, 0], [], []>} : vector<9x16xbf16>, vector<9x16xbf16>, vector<9x9xf32> -> vector<9x9xf32>
    %cst_32 = arith.constant dense<0xFF800000> : vector<9xf32>
    %88 = vector.multi_reduction <maximumf>, %87, %cst_32 [1] : vector<9x9xf32> to vector<9xf32>
    %89 = vector.shape_cast %88 : vector<9xf32> to vector<9x1xf32>
    %90 = vector.broadcast %89 : vector<9x1xf32> to vector<9x9xf32>
    %91 = arith.subf %87, %90 : vector<9x9xf32>
    %92 = math.exp %91 : vector<9x9xf32>
    %cst_33 = arith.constant dense<0.000000e+00> : vector<9xf32>
    %93 = vector.multi_reduction <add>, %92, %cst_33 [1] : vector<9x9xf32> to vector<9xf32>
    %94 = vector.shape_cast %93 : vector<9xf32> to vector<9x1xf32>
    %95 = vector.broadcast %94 : vector<9x1xf32> to vector<9x9xf32>
    %96 = arith.divf %92, %95 : vector<9x9xf32>
    %97 = arith.truncf %96 : vector<9x9xf32> to vector<9x9xbf16>
    %cst_34 = arith.constant dense<0.000000e+00> : vector<9x16xf32>
    %98 = tpu.matmul %97, %86, %cst_34 {dimension_numbers = #tpu.dot_dimension_numbers<[1], [0], [0], [1], [0, 0, 1, 1], [], []>} : vector<9x9xbf16>, vector<9x16xbf16>, vector<9x16xf32> -> vector<9x16xf32>
    %99 = arith.truncf %98 : vector<9x16xf32> to vector<9x16xbf16>
    %100 = vector.extract_strided_slice %27 {offsets = [16, 0], sizes = [16, 32], strides = [1, 1]} : vector<32x32xbf16> to vector<16x32xbf16>
    %cst_35 = arith.constant dense<0.000000e+00> : vector<9x32xf32>
    %101 = tpu.matmul %99, %100, %cst_35 {dimension_numbers = #tpu.dot_dimension_numbers<[1], [0], [0], [1], [0, 0, 1, 1], [], []>} : vector<9x16xbf16>, vector<16x32xbf16>, vector<9x32xf32> -> vector<9x32xf32>
    %102 = arith.addf %83, %101 : vector<9x32xf32>
    %c9 = arith.constant 9 : index
    %c0_36 = arith.constant 0 : index
    %103 = vector.load %arg13[%c9, %c0_36] : memref<18x32xf32, #tpu.memory_space<vmem>>, vector<9x32xf32>
    tpu.vector_store %arg13[%c9, %c0_36], %102 {strides = array<i32>} : memref<18x32xf32, #tpu.memory_space<vmem>>, vector<9x32xf32>,
    %c0_37 = arith.constant 0 : index
    %c0_38 = arith.constant 0 : index
    %104 = vector.load %arg13[%c0_37, %c0_38] : memref<18x32xf32, #tpu.memory_space<vmem>>, vector<18x32xf32>
    %c0_39 = arith.constant 0 : index
    %c0_40 = arith.constant 0 : index
    %105 = vector.load %arg6[%c0_39, %c0_40] : memref<1x32xf32, #tpu.memory_space<vmem>>, vector<1x32xf32>
    %106 = vector.broadcast %105 : vector<1x32xf32> to vector<18x32xf32>
    %107 = arith.addf %104, %106 : vector<18x32xf32>
    %108 = arith.addf %107, %0 : vector<18x32xf32>
    %c0_41 = arith.constant 0 : index
    %c0_42 = arith.constant 0 : index
    %109 = vector.load %arg7[%c0_41, %c0_42] : memref<1x32xf32, #tpu.memory_space<vmem>>, vector<1x32xf32>
    %c0_43 = arith.constant 0 : index
    %c0_44 = arith.constant 0 : index
    %110 = vector.load %arg8[%c0_43, %c0_44] : memref<1x32xf32, #tpu.memory_space<vmem>>, vector<1x32xf32>
    %cst_45 = arith.constant dense<0.000000e+00> : vector<18xf32>
    %111 = vector.multi_reduction <add>, %108, %cst_45 [1] : vector<18x32xf32> to vector<18xf32>
    %112 = vector.shape_cast %111 : vector<18xf32> to vector<18x1xf32>
    %cst_46 = arith.constant 3.200000e+01 : f32
    %113 = vector.broadcast %cst_46 : f32 to vector<18x1xf32>
    %114 = arith.divf %112, %113 : vector<18x1xf32>
    %115 = vector.broadcast %114 : vector<18x1xf32> to vector<18x32xf32>
    %116 = arith.subf %108, %115 : vector<18x32xf32>
    %117 = arith.mulf %116, %116 : vector<18x32xf32>
    %cst_47 = arith.constant dense<0.000000e+00> : vector<18xf32>
    %118 = vector.multi_reduction <add>, %117, %cst_47 [1] : vector<18x32xf32> to vector<18xf32>
    %119 = vector.shape_cast %118 : vector<18xf32> to vector<18x1xf32>
    %cst_48 = arith.constant 3.200000e+01 : f32
    %120 = vector.broadcast %cst_48 : f32 to vector<18x1xf32>
    %121 = arith.divf %119, %120 : vector<18x1xf32>
    %cst_49 = arith.constant 9.99999974E-6 : f32
    %122 = vector.broadcast %cst_49 : f32 to vector<18x1xf32>
    %123 = arith.addf %121, %122 : vector<18x1xf32>
    %124 = math.rsqrt %123 : vector<18x1xf32>
    %125 = vector.broadcast %124 : vector<18x1xf32> to vector<18x32xf32>
    %126 = arith.mulf %116, %125 : vector<18x32xf32>
    %127 = vector.broadcast %109 : vector<1x32xf32> to vector<18x32xf32>
    %128 = arith.mulf %126, %127 : vector<18x32xf32>
    %129 = vector.broadcast %110 : vector<1x32xf32> to vector<18x32xf32>
    %130 = arith.addf %128, %129 : vector<18x32xf32>
    %131 = arith.truncf %130 : vector<18x32xf32> to vector<18x32xbf16>
    %c0_50 = arith.constant 0 : index
    %c0_51 = arith.constant 0 : index
    %132 = vector.load %arg9[%c0_50, %c0_51] : memref<32x64xbf16, #tpu.memory_space<vmem>>, vector<32x64xbf16>
    %cst_52 = arith.constant dense<0.000000e+00> : vector<18x64xf32>
    %133 = tpu.matmul %131, %132, %cst_52 {dimension_numbers = #tpu.dot_dimension_numbers<[1], [0], [0], [1], [0, 0, 1, 1], [], []>} : vector<18x32xbf16>, vector<32x64xbf16>, vector<18x64xf32> -> vector<18x64xf32>
    %c0_53 = arith.constant 0 : index
    %c0_54 = arith.constant 0 : index
    %134 = vector.load %arg10[%c0_53, %c0_54] : memref<1x64xf32, #tpu.memory_space<vmem>>, vector<1x64xf32>
    %135 = vector.broadcast %134 : vector<1x64xf32> to vector<18x64xf32>
    %136 = arith.addf %133, %135 : vector<18x64xf32>
    %cst_55 = arith.constant 5.000000e-01 : f32
    %137 = vector.broadcast %cst_55 : f32 to vector<18x64xf32>
    %138 = arith.mulf %137, %136 : vector<18x64xf32>
    %cst_56 = arith.constant 0.707106769 : f32
    %139 = vector.broadcast %cst_56 : f32 to vector<18x64xf32>
    %140 = arith.mulf %136, %139 : vector<18x64xf32>
    %141 = math.erf %140 : vector<18x64xf32>
    %cst_57 = arith.constant 1.000000e+00 : f32
    %142 = vector.broadcast %cst_57 : f32 to vector<18x64xf32>
    %143 = arith.addf %142, %141 : vector<18x64xf32>
    %144 = arith.mulf %138, %143 : vector<18x64xf32>
    %145 = arith.truncf %144 : vector<18x64xf32> to vector<18x64xbf16>
    %c0_58 = arith.constant 0 : index
    %c0_59 = arith.constant 0 : index
    %146 = vector.load %arg11[%c0_58, %c0_59] : memref<64x32xbf16, #tpu.memory_space<vmem>>, vector<64x32xbf16>
    %cst_60 = arith.constant dense<0.000000e+00> : vector<18x32xf32>
    %147 = tpu.matmul %145, %146, %cst_60 {dimension_numbers = #tpu.dot_dimension_numbers<[1], [0], [0], [1], [0, 0, 1, 1], [], []>} : vector<18x64xbf16>, vector<64x32xbf16>, vector<18x32xf32> -> vector<18x32xf32>
    %c0_61 = arith.constant 0 : index
    %c0_62 = arith.constant 0 : index
    %148 = vector.load %arg12[%c0_61, %c0_62] : memref<1x32xf32, #tpu.memory_space<vmem>>, vector<1x32xf32>
    %149 = vector.broadcast %148 : vector<1x32xf32> to vector<18x32xf32>
    %150 = arith.addf %147, %149 : vector<18x32xf32>
    %151 = arith.addf %150, %108 : vector<18x32xf32>
    %152 = arith.addf %151, %0 : vector<18x32xf32>
    %c0_63 = arith.constant 0 : index
    %c0_64 = arith.constant 0 : index
    %153 = vector.load %arg13[%c0_63, %c0_64] : memref<18x32xf32, #tpu.memory_space<vmem>>, vector<18x32xf32>
    tpu.vector_store %arg13[%c0_63, %c0_64], %152 {strides = array<i32>} : memref<18x32xf32, #tpu.memory_space<vmem>>, vector<18x32xf32>,
    return
  }
  func.func @transform_0(%arg0: i32) -> (i32, i32) {
    %c0_i32 = arith.constant 0 : i32
    %c0_i32_0 = arith.constant 0 : i32
    %c0_i32_1 = arith.constant 0 : i32
    return %c0_i32, %c0_i32_0 : i32, i32
  }
  func.func @transform_1(%arg0: i32) -> (i32, i32) {
    %c0_i32 = arith.constant 0 : i32
    %c0_i32_0 = arith.constant 0 : i32
    %c0_i32_1 = arith.constant 0 : i32
    return %c0_i32, %c0_i32_0 : i32, i32
  }
  func.func @transform_2(%arg0: i32) -> (i32, i32) {
    %c0_i32 = arith.constant 0 : i32
    %c0_i32_0 = arith.constant 0 : i32
    %c0_i32_1 = arith.constant 0 : i32
    return %c0_i32, %c0_i32_0 : i32, i32
  }
  func.func @transform_3(%arg0: i32) -> (i32, i32) {
    %c0_i32 = arith.constant 0 : i32
    %c0_i32_0 = arith.constant 0 : i32
    %c0_i32_1 = arith.constant 0 : i32
    return %c0_i32, %c0_i32_0 : i32, i32
  }
  func.func @transform_4(%arg0: i32) -> (i32, i32) {
    %c0_i32 = arith.constant 0 : i32
    %c0_i32_0 = arith.constant 0 : i32
    %c0_i32_1 = arith.constant 0 : i32
    return %c0_i32, %c0_i32_0 : i32, i32
  }
  func.func @transform_5(%arg0: i32) -> (i32, i32) {
    %c0_i32 = arith.constant 0 : i32
    %c0_i32_0 = arith.constant 0 : i32
    %c0_i32_1 = arith.constant 0 : i32
    return %c0_i32, %c0_i32_0 : i32, i32
  }
  func.func @transform_6(%arg0: i32) -> (i32, i32) {
    %c0_i32 = arith.constant 0 : i32
    %c0_i32_0 = arith.constant 0 : i32
    %c0_i32_1 = arith.constant 0 : i32
    return %c0_i32, %c0_i32_0 : i32, i32
  }
  func.func @transform_7(%arg0: i32) -> (i32, i32) {
    %c0_i32 = arith.constant 0 : i32
    %c0_i32_0 = arith.constant 0 : i32
    %c0_i32_1 = arith.constant 0 : i32
    return %c0_i32, %c0_i32_0 : i32, i32
  }
  func.func @transform_8(%arg0: i32) -> (i32, i32) {
    %c0_i32 = arith.constant 0 : i32
    %c0_i32_0 = arith.constant 0 : i32
    %c0_i32_1 = arith.constant 0 : i32
    return %c0_i32, %c0_i32_0 : i32, i32
  }
  func.func @transform_9(%arg0: i32) -> (i32, i32) {
    %c0_i32 = arith.constant 0 : i32
    %c0_i32_0 = arith.constant 0 : i32
    %c0_i32_1 = arith.constant 0 : i32
    return %c0_i32, %c0_i32_0 : i32, i32
  }
  func.func @transform_10(%arg0: i32) -> (i32, i32) {
    %c0_i32 = arith.constant 0 : i32
    %c0_i32_0 = arith.constant 0 : i32
    %c0_i32_1 = arith.constant 0 : i32
    return %c0_i32, %c0_i32_0 : i32, i32
  }
  func.func @transform_11(%arg0: i32) -> (i32, i32) {
    %c0_i32 = arith.constant 0 : i32
    %c0_i32_0 = arith.constant 0 : i32
    %c0_i32_1 = arith.constant 0 : i32
    return %c0_i32, %c0_i32_0 : i32, i32
  }
  func.func @transform_12(%arg0: i32) -> (i32, i32) {
    %c0_i32 = arith.constant 0 : i32
    %c0_i32_0 = arith.constant 0 : i32
    %c0_i32_1 = arith.constant 0 : i32
    return %c0_i32, %c0_i32_0 : i32, i32
  }
}

</mosaic_0001>

<llo_original>
// kernel: tpu_custom_call.1
$region0: #{tpu_custom_call.1}
  #allocation0 [shape = 'u32[]', space=smem, size = 0x4, offset = 0x4, fixed_abs, tag = 'smem constant byte address 0x4 - core index']
  #allocation1 [shape = 'u32[144,128]{1,0:T(1,128)}', space=vmem, size = 0x12000, scoped, tag = 'internal scratch']
  %s0 = inlined_call_operand.vmem [shape: f32[18,32], index: 0, kind: input, shape index: {}]
  %s1 = inlined_call_operand.vmem [shape: f32[1,32], index: 1, kind: input, shape index: {}]
  %s2 = inlined_call_operand.vmem [shape: f32[1,32], index: 2, kind: input, shape index: {}]
  %s3 = inlined_call_operand.vmem [shape: bf16[32,96], index: 3, kind: input, shape index: {}]
  %s4 = inlined_call_operand.vmem [shape: bf16[32,32], index: 4, kind: input, shape index: {}]
  %s5 = inlined_call_operand.vmem [shape: f32[1,32], index: 5, kind: input, shape index: {}]
  %s6 = inlined_call_operand.vmem [shape: f32[1,32], index: 6, kind: input, shape index: {}]
  %s7 = inlined_call_operand.vmem [shape: f32[1,32], index: 7, kind: input, shape index: {}]
  %s8 = inlined_call_operand.hbm [shape: bf16[32,64], index: 8, kind: input, shape index: {}]
  %s9 = inlined_call_operand.vmem [shape: f32[1,64], index: 9, kind: input, shape index: {}]
  %s10 = inlined_call_operand.vmem [shape: bf16[64,32], index: 10, kind: input, shape index: {}]
  %s11 = inlined_call_operand.vmem [shape: f32[1,32], index: 11, kind: input, shape index: {}]
  %s12 = inlined_call_operand.hbm [shape: f32[18,32], index: 12, kind: output, shape index: {}]
  %s13 = sld [smem:[#allocation0]]
  $region62: #{tpu_custom_call.1} parent=0
    _
  %s15 = ssub.s32 1, %s13
  %s16 = scalar_select 0, %s15, %s13
  $region1: #{tpu_custom_call.1} parent=0
    #allocation2 [shape = 'u8[8192]{0}', space=vmem, size = 0x2000, scoped, tag = 'input window, operand 8, single buffered']
    #allocation3 [shape = 's32[1]{0}', space=sflag, size = 0x4, scoped, tag = 'scoped memory for tpu_custom_call.1']
    #allocation4 [shape = 's32[1]{0}', space=sflag, size = 0x4, scoped, tag = 'scoped memory for tpu_custom_call.1']
    #allocation5 [shape = 'u8[12288]{0}', space=vmem, size = 0x3000, scoped, tag = 'output window, operand 0, single buffered']
    %17 = vsyncpa [#allocation3], 0
    %18 = vsyncpa [#allocation4], 0
    // Predicated region
    $region2: #{tpu_custom_call.1} parent=1 // pred_check
      _
    $region3: #{tpu_custom_call.1} parent=1 // pred_check_branch
      %20 = sbr.rel (0) target = $region5
    $region4: #{tpu_custom_call.1} parent=1 // pred_region
      _
    $region5: #{tpu_custom_call.1} parent=1 // pred_fallthru
      _
    // Predicated region
    $region6: #{tpu_custom_call.1} parent=1 // pred_check
      _
    $region7: #{tpu_custom_call.1} parent=1 // pred_check_branch
      %22 = sbr.rel (0) target = $region9
    $region8: #{tpu_custom_call.1} parent=1 // pred_region
      _
    $region9: #{tpu_custom_call.1} parent=1 // pred_fallthru
      _
    // Predicated region
    $region10: #{tpu_custom_call.1} parent=1 // pred_check
      _
    $region11: #{tpu_custom_call.1} parent=1 // pred_check_branch
      %24 = sbr.rel (0) target = $region13
    $region12: #{tpu_custom_call.1} parent=1 // pred_region
      _
    $region13: #{tpu_custom_call.1} parent=1 // pred_fallthru
      _
    // Predicated region
    $region14: #{tpu_custom_call.1} parent=1 // pred_check
      _
    $region15: #{tpu_custom_call.1} parent=1 // pred_check_branch
      %26 = sbr.rel (0) target = $region17
    $region16: #{tpu_custom_call.1} parent=1 // pred_region
      _
    $region17: #{tpu_custom_call.1} parent=1 // pred_fallthru
      _
    // Predicated region
    $region18: #{tpu_custom_call.1} parent=1 // pred_check
      _
    $region19: #{tpu_custom_call.1} parent=1 // pred_check_branch
      %28 = sbr.rel (0) target = $region21
    $region20: #{tpu_custom_call.1} parent=1 // pred_region
      _
    $region21: #{tpu_custom_call.1} parent=1 // pred_fallthru
      _
    // Predicated region
    $region22: #{tpu_custom_call.1} parent=1 // pred_check
      _
    $region23: #{tpu_custom_call.1} parent=1 // pred_check_branch
      %30 = sbr.rel (0) target = $region25
    $region24: #{tpu_custom_call.1} parent=1 // pred_region
      _
    $region25: #{tpu_custom_call.1} parent=1 // pred_fallthru
      _
    // Predicated region
    $region26: #{tpu_custom_call.1} parent=1 // pred_check
      _
    $region27: #{tpu_custom_call.1} parent=1 // pred_check_branch
      %32 = sbr.rel (0) target = $region29
    $region28: #{tpu_custom_call.1} parent=1 // pred_region
      _
    $region29: #{tpu_custom_call.1} parent=1 // pred_fallthru
      _
    // Predicated region
    $region30: #{tpu_custom_call.1} parent=1 // pred_check
      _
    $region31: #{tpu_custom_call.1} parent=1 // pred_check_branch
      %34 = sbr.rel (0) target = $region33
    $region32: #{tpu_custom_call.1} parent=1 // pred_region
      _
    $region33: #{tpu_custom_call.1} parent=1 // pred_fallthru
      _
    // Predicated region
    $region34: #{tpu_custom_call.1} parent=1 // pred_check
      _
    $region35: #{tpu_custom_call.1} parent=1 // pred_check_branch
      %36 = sbr.rel (0) target = $region37
    $region36: #{tpu_custom_call.1} parent=1 // pred_region
      %s38 = ssub.s32 256, 256
      %39 = vsyncadd [#allocation3], %s38
      %s40 = sshll.u32 [#allocation2], 4
      %s41 = int_to_ptr.vmem [resolvable:$true] %s40
      %46 = dma.hbm_to_vmem [thread:$0]  %s8, 256, %s41, [#allocation3], 64, 64, 4
    $region37: #{tpu_custom_call.1} parent=1 // pred_fallthru
      _
    // Predicated region
    $region38: #{tpu_custom_call.1} parent=1 // pred_check
      _
    $region39: #{tpu_custom_call.1} parent=1 // pred_check_branch
      %48 = sbr.rel (0) target = $region41
    $region40: #{tpu_custom_call.1} parent=1 // pred_region
      _
    $region41: #{tpu_custom_call.1} parent=1 // pred_fallthru
      _
    // Predicated region
    $region42: #{tpu_custom_call.1} parent=1 // pred_check
      _
    $region43: #{tpu_custom_call.1} parent=1 // pred_check_branch
      %50 = sbr.rel (0) target = $region45
    $region44: #{tpu_custom_call.1} parent=1 // pred_region
      _
    $region45: #{tpu_custom_call.1} parent=1 // pred_fallthru
      _
    // Predicated region
    $region46: #{tpu_custom_call.1} parent=1 // pred_check
      _
    $region47: #{tpu_custom_call.1} parent=1 // pred_check_branch
      %52 = sbr.rel (0) target = $region49
    $region48: #{tpu_custom_call.1} parent=1 // pred_region
      _
    $region49: #{tpu_custom_call.1} parent=1 // pred_fallthru
      _
    // Predicated region
    $region50: #{tpu_custom_call.1} parent=1 // pred_check
      _
    $region51: #{tpu_custom_call.1} parent=1 // pred_check_branch
      %54 = sbr.rel (0) target = $region53
    $region52: #{tpu_custom_call.1} parent=1 // pred_region
      %55 = dma.done [#allocation3], 256
    $region53: #{tpu_custom_call.1} parent=1 // pred_fallthru
      _
    %v57 = vld [vmem:[%s0] sm:$0xff]
    %v58 = vld [vmem:[%s0 + $0x8] sm:$0xff]
    %v59 = vld [vmem:[%s0 + $0x10] sm:$0x3]
    %v60 = vld [vmem:[%s1] sm:$0x1]
    %v61 = vld [vmem:[%s2] sm:$0x1]
    %vm62 = vcmask 261120
    %v63 = vsel %vm62, %v57, 0.0
    %64 = vadd.xlane.f32.xlu0 %v63
    %v65 = vpop.xlane.xlu0 %64
    %v66 = vsel %vm62, %v58, 0.0
    %67 = vadd.xlane.f32.xlu0 %v66
    %v68 = vpop.xlane.xlu0 %67
    %vm69 = vcmask 254976
    %v70 = vsel %vm69, %v59, 0.0
    %71 = vadd.xlane.f32.xlu0 %v70
    %v72 = vpop.xlane.xlu0 %71
    %v73 = vrcp.pop 32.0
    %v74 = vmul.f32 %v65, %v73
    %v75 = vmul.f32 %v68, %v73
    %v76 = vmul.f32 %v72, %v73
    %v77 = vsub.f32 %v57, %v74
    %v78 = vsub.f32 %v58, %v75
    %v79 = vsub.f32 %v59, %v76
    %v80 = vmul.f32 %v77, %v77
    %v81 = vmul.f32 %v78, %v78
    %v82 = vmul.f32 %v79, %v79
    %v83 = vsel %vm62, %v80, 0.0
    %84 = vadd.xlane.f32.xlu0 %v83
    %v85 = vpop.xlane.xlu0 %84
    %v86 = vsel %vm62, %v81, 0.0
    %87 = vadd.xlane.f32.xlu0 %v86
    %v88 = vpop.xlane.xlu0 %87
    %v89 = vsel %vm69, %v82, 0.0
    %90 = vadd.xlane.f32.xlu0 %v89
    %v91 = vpop.xlane.xlu0 %90
    %v92 = vmul.f32 %v85, %v73
    %v93 = vmul.f32 %v88, %v73
    %v94 = vmul.f32 %v91, %v73
    %v95 = vadd.f32 %v92, 1e-05
    %v96 = vadd.f32 %v93, 1e-05
    %v97 = vadd.f32 %v94, 1e-05
    %v98 = vrsqrt.pop %v95
    %v99 = vrsqrt.pop %v96
    %v100 = vrsqrt.pop %v97
    %v101 = vmul.f32 %v77, %v98
    %v102 = vmul.f32 %v78, %v99
    %v103 = vmul.f32 %v79, %v100
    %v105 = vlaneseq
    %v106 = vshrl.u32 %v105, 7
    %v107 = vsub.s32 0, %v106
    %v108 = vrot.slane %v60, %v107
    %v110 = vmul.f32 %v101, %v108
    %v111 = vmul.f32 %v102, %v108
    %v112 = vmul.f32 %v103, %v108
    %v114 = vlaneseq
    %v115 = vshrl.u32 %v114, 7
    %v116 = vsub.s32 0, %v115
    %v117 = vrot.slane %v61, %v116
    %v119 = vadd.f32 %v110, %v117
    %v120 = vadd.f32 %v111, %v117
    %v121 = vadd.f32 %v112, %v117
    %v122 = vpack.c.bf16 %v120, %v119
    %v123 = vpack.c.bf16 %v121, %v121
    %v124 = vld [vmem:[%s3] sm:$0xf]
    %v125 = vld [vmem:[%s3 + $0x4] sm:$0xf]
    %v126 = vld [vmem:[%s3 + $0x8] sm:$0xf]
    %v127 = vld [vmem:[%s3 + $0xc] sm:$0xf]
    %v132 = vunpack.c.l.b16 %v124
    %v133 = vunpack.c.l.b16 %v125
    %v134 = vunpack.c.l.b16 %v126
    %v135 = vunpack.c.l.b16 %v127
    %v136 = vpack.c.b16 %v133, %v132
    %v137 = vpack.c.b16 %v135, %v134
    %v141 = vsel %vm62, %v122, 0
    %v144 = vsel %vm62, %v123, 0
    %146 = vmatprep.subr.bf16.mxu0 0
    %147 = vmatpush1.bf16.msra.mxu0 %v136
    %148 = vmatprep.subr.bf16.mxu0 0
    %149 = vmatpush1.bf16.msra.mxu0 %v137
    %150 = vmatprep.subr.bf16.mxu0 0
    %151 = vmatpush1.bf16.msra.mxu0 0
    %152 = vmatprep.subr.bf16.mxu0 0
    %153 = vmatpush1.bf16.msra.mxu0 0
    %154 = vmatprep.subr.bf16.mxu0 0
    %155 = vmatpush1.bf16.msra.mxu0 0
    %156 = vmatprep.subr.bf16.mxu0 0
    %157 = vmatpush1.bf16.msra.mxu0 0
    %158 = vmatprep.subr.bf16.mxu0 0
    %159 = vmatpush1.bf16.msra.mxu0 0
    %160 = vmatprep.subr.bf16.mxu0 0
    %161 = vmatpush1.bf16.msra.mxu0 0
    %162 = vmatprep.subr.bf16.mxu0 0
    %163 = vmatpush1.bf16.msra.mxu0 0
    %164 = vmatprep.subr.bf16.mxu0 0
    %165 = vmatpush1.bf16.msra.mxu0 0
    %166 = vmatprep.subr.bf16.mxu0 0
    %167 = vmatpush1.bf16.msra.mxu0 0
    %168 = vmatprep.subr.bf16.mxu0 0
    %169 = vmatpush1.bf16.msra.mxu0 0
    %170 = vmatprep.subr.bf16.mxu0 0
    %171 = vmatpush1.bf16.msra.mxu0 0
    %172 = vmatprep.subr.bf16.mxu0 0
    %173 = vmatpush1.bf16.msra.mxu0 0
    %174 = vmatprep.subr.bf16.mxu0 0
    %175 = vmatpush1.bf16.msra.mxu0 0
    %176 = vmatprep.subr.bf16.mxu0 0
    %177 = vmatpush1.bf16.msra.mxu0 0
    %178 = vmatprep.mubr.bf16.mxu0 0
    %179 = vmatmul.mubr.bf16.gmra.mrb[0].mxu0 %v141
    %v180 = vpop.f32.mrb[0].mxu0
    %v181 = vadd.f32 0.0, %v180
    %v182 = vpop.f32.mrb[0].mxu0
    %v183 = vpop.f32.mrb[0].mxu0
    %v184 = vadd.f32 0.0, %v183
    %v185 = vpop.f32.mrb[0].mxu0
    %186 = vmatprep.mubr.bf16.mxu0 0
    %187 = vmatmul.mubr.bf16.gmra.mrb[0].mxu0 %v144
    %v188 = vpop.f32.mrb[0].mxu0
    %v189 = vadd.f32 0.0, %v188
    %v190 = vpop.f32.mrb[0].mxu0
    %v191 = vpop.f32.mrb[0].mxu0
    %v192 = vpop.f32.mrb[0].mxu0
    %193 = vdwg.mxu0
    %v194 = vpack.c.bf16 %v184, %v181
    %v195 = vpack.c.bf16 %v189, %v189
    %v196 = vld [vmem:[%s4] sm:$0xf]
    %v197 = vld [vmem:[%s4 + $0x4] sm:$0xf]
    %v198 = vld [vmem:[%s4 + $0x8] sm:$0xf]
    %v199 = vld [vmem:[%s4 + $0xc] sm:$0xf]
    %201 = vrot.lane.b32.xlu0 %v194, 96
    %v202 = vpop.permute.xlu0 %201
    %vm203 = vcmask 130048
    %v205 = vsel %vm203, %v194, 0
    %v208 = vsel %vm203, %v202, 0
    %210 = vmatprep.subr.bf16.mxu0 0
    %211 = vmatpush1.bf16.xpose.msra.mxu0 %v208
    %212 = vmatprep.subr.bf16.mxu0 0
    %213 = vmatpush1.bf16.xpose.msra.mxu0 0
    %214 = vmatprep.subr.bf16.mxu0 0
    %215 = vmatpush1.bf16.xpose.msra.mxu0 0
    %216 = vmatprep.subr.bf16.mxu0 0
    %217 = vmatpush1.bf16.xpose.msra.mxu0 0
    %218 = vmatprep.subr.bf16.mxu0 0
    %219 = vmatpush1.bf16.xpose.msra.mxu0 0
    %220 = vmatprep.subr.bf16.mxu0 0
    %221 = vmatpush1.bf16.xpose.msra.mxu0 0
    %222 = vmatprep.subr.bf16.mxu0 0
    %223 = vmatpush1.bf16.xpose.msra.mxu0 0
    %224 = vmatprep.subr.bf16.mxu0 0
    %225 = vmatpush1.bf16.xpose.msra.mxu0 0
    %226 = vmatprep.subr.bf16.mxu0 0
    %227 = vmatpush1.bf16.xpose.msra.mxu0 0
    %228 = vmatprep.subr.bf16.mxu0 0
    %229 = vmatpush1.bf16.xpose.msra.mxu0 0
    %230 = vmatprep.subr.bf16.mxu0 0
    %231 = vmatpush1.bf16.xpose.msra.mxu0 0
    %232 = vmatprep.subr.bf16.mxu0 0
    %233 = vmatpush1.bf16.xpose.msra.mxu0 0
    %234 = vmatprep.subr.bf16.mxu0 0
    %235 = vmatpush1.bf16.xpose.msra.mxu0 0
    %236 = vmatprep.subr.bf16.mxu0 0
    %237 = vmatpush1.bf16.xpose.msra.mxu0 0
    %238 = vmatprep.subr.bf16.mxu0 0
    %239 = vmatpush1.bf16.xpose.msra.mxu0 0
    %240 = vmatprep.subr.bf16.mxu0 0
    %241 = vmatpush1.bf16.xpose.msra.mxu0 0
    %242 = vmatprep.mubr.bf16.mxu0 0
    %243 = vmatmul.mubr.bf16.gmra.mrb[0].mxu0 %v205
    %v244 = vpop.f32.mrb[0].mxu0
    %v245 = vadd.f32 0.0, %v244
    %v246 = vpop.f32.mrb[0].mxu0
    %v247 = vpop.f32.mrb[0].mxu0
    %v248 = vadd.f32 0.0, %v247
    %v249 = vpop.f32.mrb[0].mxu0
    %250 = vdwg.mxu0
    %vm251 = vcmask 72704
    %v252 = vsel %vm251, %v245, -inf
    %253 = vmax.xlane.f32.xlu0 %v252
    %v254 = vpop.xlane.xlu0 %253
    %vm255 = vcmask 65536
    %v256 = vsel %vm255, %v248, -inf
    %257 = vmax.xlane.f32.xlu0 %v256
    %v258 = vpop.xlane.xlu0 %257
    %v259 = vsub.f32 %v245, %v254
    %v260 = vsub.f32 %v248, %v258
    %v261 = vmul.f32 %v259, 1.442695
    %v262 = vpow.pop %v261
    %v263 = vmul.f32 %v260, 1.442695
    %v264 = vpow.pop %v263
    %v265 = vsel %vm251, %v262, 0.0
    %266 = vadd.xlane.f32.xlu0 %v265
    %v267 = vpop.xlane.xlu0 %266
    %v268 = vsel %vm255, %v264, 0.0
    %269 = vadd.xlane.f32.xlu0 %v268
    %v270 = vpop.xlane.xlu0 %269
    %v271 = vrcp.pop %v267
    %v272 = vmul.f32 %v262, %v271
    %v273 = vrcp.pop %v270
    %v274 = vmul.f32 %v264, %v273
    %v275 = vpack.c.bf16 %v274, %v272
    %276 = vrot.lane.b32.xlu0 %v194, 64
    %v277 = vpop.permute.xlu0 %276
    %v279 = vsel %vm251, %v275, 0
    %vm281 = vcmask 1043456
    %vm282 = vcmask 1044480
    %v283 = vsel %vm281, 4294967295, 65535
    %v284 = vsel %vm282, %v283, 0
    %v286 = vand.u32 %v277, %v284
    %288 = vmatprep.subr.bf16.mxu0 0
    %289 = vmatpush1.bf16.msra.mxu0 %v286
    %290 = vmatprep.subr.bf16.mxu0 0
    %291 = vmatpush1.bf16.msra.mxu0 0
    %292 = vmatprep.subr.bf16.mxu0 0
    %293 = vmatpush1.bf16.msra.mxu0 0
    %294 = vmatprep.subr.bf16.mxu0 0
    %295 = vmatpush1.bf16.msra.mxu0 0
    %296 = vmatprep.subr.bf16.mxu0 0
    %297 = vmatpush1.bf16.msra.mxu0 0
    %298 = vmatprep.subr.bf16.mxu0 0
    %299 = vmatpush1.bf16.msra.mxu0 0
    %300 = vmatprep.subr.bf16.mxu0 0
    %301 = vmatpush1.bf16.msra.mxu0 0
    %302 = vmatprep.subr.bf16.mxu0 0
    %303 = vmatpush1.bf16.msra.mxu0 0
    %304 = vmatprep.subr.bf16.mxu0 0
    %305 = vmatpush1.bf16.msra.mxu0 0
    %306 = vmatprep.subr.bf16.mxu0 0
    %307 = vmatpush1.bf16.msra.mxu0 0
    %308 = vmatprep.subr.bf16.mxu0 0
    %309 = vmatpush1.bf16.msra.mxu0 0
    %310 = vmatprep.subr.bf16.mxu0 0
    %311 = vmatpush1.bf16.msra.mxu0 0
    %312 = vmatprep.subr.bf16.mxu0 0
    %313 = vmatpush1.bf16.msra.mxu0 0
    %314 = vmatprep.subr.bf16.mxu0 0
    %315 = vmatpush1.bf16.msra.mxu0 0
    %316 = vmatprep.subr.bf16.mxu0 0
    %317 = vmatpush1.bf16.msra.mxu0 0
    %318 = vmatprep.subr.bf16.mxu0 0
    %319 = vmatpush1.bf16.msra.mxu0 0
    %320 = vmatprep.mubr.bf16.mxu0 0
    %321 = vmatmul.mubr.bf16.gmra.mrb[0].mxu0 %v279
    %v322 = vpop.f32.mrb[0].mxu0
    %v323 = vadd.f32 0.0, %v322
    %v324 = vpop.f32.mrb[0].mxu0
    %v325 = vpop.f32.mrb[0].mxu0
    %v326 = vadd.f32 0.0, %v325
    %v327 = vpop.f32.mrb[0].mxu0
    %328 = vdwg.mxu0
    %v329 = vpack.c.bf16 %v326, %v323
    %330 = vrot.lane.b32.xlu0 %v194, 112
    %v331 = vpop.permute.xlu0 %330
    %332 = vrot.lane.b32.xlu0 %v194, 80
    %v333 = vpop.permute.xlu0 %332
    %v335 = vsel %vm203, %v331, 0
    %v338 = vsel %vm203, %v333, 0
    %340 = vmatprep.subr.bf16.mxu0 0
    %341 = vmatpush1.bf16.xpose.msra.mxu0 %v338
    %342 = vmatprep.subr.bf16.mxu0 0
    %343 = vmatpush1.bf16.xpose.msra.mxu0 0
    %344 = vmatprep.subr.bf16.mxu0 0
    %345 = vmatpush1.bf16.xpose.msra.mxu0 0
    %346 = vmatprep.subr.bf16.mxu0 0
    %347 = vmatpush1.bf16.xpose.msra.mxu0 0
    %348 = vmatprep.subr.bf16.mxu0 0
    %349 = vmatpush1.bf16.xpose.msra.mxu0 0
    %350 = vmatprep.subr.bf16.mxu0 0
    %351 = vmatpush1.bf16.xpose.msra.mxu0 0
    %352 = vmatprep.subr.bf16.mxu0 0
    %353 = vmatpush1.bf16.xpose.msra.mxu0 0
    %354 = vmatprep.subr.bf16.mxu0 0
    %355 = vmatpush1.bf16.xpose.msra.mxu0 0
    %356 = vmatprep.subr.bf16.mxu0 0
    %357 = vmatpush1.bf16.xpose.msra.mxu0 0
    %358 = vmatprep.subr.bf16.mxu0 0
    %359 = vmatpush1.bf16.xpose.msra.mxu0 0
    %360 = vmatprep.subr.bf16.mxu0 0
    %361 = vmatpush1.bf16.xpose.msra.mxu0 0
    %362 = vmatprep.subr.bf16.mxu0 0
    %363 = vmatpush1.bf16.xpose.msra.mxu0 0
    %364 = vmatprep.subr.bf16.mxu0 0
    %365 = vmatpush1.bf16.xpose.msra.mxu0 0
    %366 = vmatprep.subr.bf16.mxu0 0
    %367 = vmatpush1.bf16.xpose.msra.mxu0 0
    %368 = vmatprep.subr.bf16.mxu0 0
    %369 = vmatpush1.bf16.xpose.msra.mxu0 0
    %370 = vmatprep.subr.bf16.mxu0 0
    %371 = vmatpush1.bf16.xpose.msra.mxu0 0
    %372 = vmatprep.mubr.bf16.mxu0 0
    %373 = vmatmul.mubr.bf16.gmra.mrb[0].mxu0 %v335
    %v374 = vpop.f32.mrb[0].mxu0
    %v375 = vadd.f32 0.0, %v374
    %v376 = vpop.f32.mrb[0].mxu0
    %v377 = vpop.f32.mrb[0].mxu0
    %v378 = vadd.f32 0.0, %v377
    %v379 = vpop.f32.mrb[0].mxu0
    %380 = vdwg.mxu0
    %v381 = vsel %vm251, %v375, -inf
    %382 = vmax.xlane.f32.xlu0 %v381
    %v383 = vpop.xlane.xlu0 %382
    %v384 = vsel %vm255, %v378, -inf
    %385 = vmax.xlane.f32.xlu0 %v384
    %v386 = vpop.xlane.xlu0 %385
    %v387 = vsub.f32 %v375, %v383
    %v388 = vsub.f32 %v378, %v386
    %v389 = vmul.f32 %v387, 1.442695
    %v390 = vpow.pop %v389
    %v391 = vmul.f32 %v388, 1.442695
    %v392 = vpow.pop %v391
    %v393 = vsel %vm251, %v390, 0.0
    %394 = vadd.xlane.f32.xlu0 %v393
    %v395 = vpop.xlane.xlu0 %394
    %v396 = vsel %vm255, %v392, 0.0
    %397 = vadd.xlane.f32.xlu0 %v396
    %v398 = vpop.xlane.xlu0 %397
    %v399 = vrcp.pop %v395
    %v400 = vmul.f32 %v390, %v399
    %v401 = vrcp.pop %v398
    %v402 = vmul.f32 %v392, %v401
    %v403 = vpack.c.bf16 %v402, %v400
    %404 = vrot.lane.b32.xlu0 %v194, 48
    %v405 = vpop.permute.xlu0 %404
    %v407 = vsel %vm251, %v403, 0
    %v410 = vand.u32 %v405, %v284
    %412 = vmatprep.subr.bf16.mxu0 0
    %413 = vmatpush1.bf16.msra.mxu0 %v410
    %414 = vmatprep.subr.bf16.mxu0 0
    %415 = vmatpush1.bf16.msra.mxu0 0
    %416 = vmatprep.subr.bf16.mxu0 0
    %417 = vmatpush1.bf16.msra.mxu0 0
    %418 = vmatprep.subr.bf16.mxu0 0
    %419 = vmatpush1.bf16.msra.mxu0 0
    %420 = vmatprep.subr.bf16.mxu0 0
    %421 = vmatpush1.bf16.msra.mxu0 0
    %422 = vmatprep.subr.bf16.mxu0 0
    %423 = vmatpush1.bf16.msra.mxu0 0
    %424 = vmatprep.subr.bf16.mxu0 0
    %425 = vmatpush1.bf16.msra.mxu0 0
    %426 = vmatprep.subr.bf16.mxu0 0
    %427 = vmatpush1.bf16.msra.mxu0 0
    %428 = vmatprep.subr.bf16.mxu0 0
    %429 = vmatpush1.bf16.msra.mxu0 0
    %430 = vmatprep.subr.bf16.mxu0 0
    %431 = vmatpush1.bf16.msra.mxu0 0
    %432 = vmatprep.subr.bf16.mxu0 0
    %433 = vmatpush1.bf16.msra.mxu0 0
    %434 = vmatprep.subr.bf16.mxu0 0
    %435 = vmatpush1.bf16.msra.mxu0 0
    %436 = vmatprep.subr.bf16.mxu0 0
    %437 = vmatpush1.bf16.msra.mxu0 0
    %438 = vmatprep.subr.bf16.mxu0 0
    %439 = vmatpush1.bf16.msra.mxu0 0
    %440 = vmatprep.subr.bf16.mxu0 0
    %441 = vmatpush1.bf16.msra.mxu0 0
    %442 = vmatprep.subr.bf16.mxu0 0
    %443 = vmatpush1.bf16.msra.mxu0 0
    %444 = vmatprep.mubr.bf16.mxu0 0
    %445 = vmatmul.mubr.bf16.gmra.mrb[0].mxu0 %v407
    %v446 = vpop.f32.mrb[0].mxu0
    %v447 = vadd.f32 0.0, %v446
    %v448 = vpop.f32.mrb[0].mxu0
    %v449 = vpop.f32.mrb[0].mxu0
    %v450 = vadd.f32 0.0, %v449
    %v451 = vpop.f32.mrb[0].mxu0
    %452 = vdwg.mxu0
    %v453 = vpack.c.bf16 %v450, %v447
    %v456 = vunpack.c.l.b16 %v198
    %v457 = vunpack.c.l.b16 %v199
    %v458 = vpack.c.b16 %v457, %v456
    %v461 = vsel %vm203, %v453, 0
    %463 = vmatprep.subr.bf16.mxu0 0
    %464 = vmatpush1.bf16.msra.mxu0 %v458
    %465 = vmatprep.subr.bf16.mxu0 0
    %466 = vmatpush1.bf16.msra.mxu0 0
    %467 = vmatprep.subr.bf16.mxu0 0
    %468 = vmatpush1.bf16.msra.mxu0 0
    %469 = vmatprep.subr.bf16.mxu0 0
    %470 = vmatpush1.bf16.msra.mxu0 0
    %471 = vmatprep.subr.bf16.mxu0 0
    %472 = vmatpush1.bf16.msra.mxu0 0
    %473 = vmatprep.subr.bf16.mxu0 0
    %474 = vmatpush1.bf16.msra.mxu0 0
    %475 = vmatprep.subr.bf16.mxu0 0
    %476 = vmatpush1.bf16.msra.mxu0 0
    %477 = vmatprep.subr.bf16.mxu0 0
    %478 = vmatpush1.bf16.msra.mxu0 0
    %479 = vmatprep.subr.bf16.mxu0 0
    %480 = vmatpush1.bf16.msra.mxu0 0
    %481 = vmatprep.subr.bf16.mxu0 0
    %482 = vmatpush1.bf16.msra.mxu0 0
    %483 = vmatprep.subr.bf16.mxu0 0
    %484 = vmatpush1.bf16.msra.mxu0 0
    %485 = vmatprep.subr.bf16.mxu0 0
    %486 = vmatpush1.bf16.msra.mxu0 0
    %487 = vmatprep.subr.bf16.mxu0 0
    %488 = vmatpush1.bf16.msra.mxu0 0
    %489 = vmatprep.subr.bf16.mxu0 0
    %490 = vmatpush1.bf16.msra.mxu0 0
    %491 = vmatprep.subr.bf16.mxu0 0
    %492 = vmatpush1.bf16.msra.mxu0 0
    %493 = vmatprep.subr.bf16.mxu0 0
    %494 = vmatpush1.bf16.msra.mxu0 0
    %495 = vmatprep.mubr.bf16.mxu0 0
    %496 = vmatmul.mubr.bf16.gmra.mrb[0].mxu0 %v461
    %v497 = vpop.f32.mrb[0].mxu0
    %v498 = vadd.f32 0.0, %v497
    %v499 = vpop.f32.mrb[0].mxu0
    %v500 = vpop.f32.mrb[0].mxu0
    %v501 = vadd.f32 0.0, %v500
    %v502 = vpop.f32.mrb[0].mxu0
    %503 = vdwg.mxu0
    %v506 = vunpack.c.l.b16 %v196
    %v507 = vunpack.c.l.b16 %v197
    %v508 = vpack.c.b16 %v507, %v506
    %v511 = vsel %vm203, %v329, 0
    %513 = vmatprep.subr.bf16.mxu0 0
    %514 = vmatpush1.bf16.msra.mxu0 %v508
    %515 = vmatprep.subr.bf16.mxu0 0
    %516 = vmatpush1.bf16.msra.mxu0 0
    %517 = vmatprep.subr.bf16.mxu0 0
    %518 = vmatpush1.bf16.msra.mxu0 0
    %519 = vmatprep.subr.bf16.mxu0 0
    %520 = vmatpush1.bf16.msra.mxu0 0
    %521 = vmatprep.subr.bf16.mxu0 0
    %522 = vmatpush1.bf16.msra.mxu0 0
    %523 = vmatprep.subr.bf16.mxu0 0
    %524 = vmatpush1.bf16.msra.mxu0 0
    %525 = vmatprep.subr.bf16.mxu0 0
    %526 = vmatpush1.bf16.msra.mxu0 0
    %527 = vmatprep.subr.bf16.mxu0 0
    %528 = vmatpush1.bf16.msra.mxu0 0
    %529 = vmatprep.subr.bf16.mxu0 0
    %530 = vmatpush1.bf16.msra.mxu0 0
    %531 = vmatprep.subr.bf16.mxu0 0
    %532 = vmatpush1.bf16.msra.mxu0 0
    %533 = vmatprep.subr.bf16.mxu0 0
    %534 = vmatpush1.bf16.msra.mxu0 0
    %535 = vmatprep.subr.bf16.mxu0 0
    %536 = vmatpush1.bf16.msra.mxu0 0
    %537 = vmatprep.subr.bf16.mxu0 0
    %538 = vmatpush1.bf16.msra.mxu0 0
    %539 = vmatprep.subr.bf16.mxu0 0
    %540 = vmatpush1.bf16.msra.mxu0 0
    %541 = vmatprep.subr.bf16.mxu0 0
    %542 = vmatpush1.bf16.msra.mxu0 0
    %543 = vmatprep.subr.bf16.mxu0 0
    %544 = vmatpush1.bf16.msra.mxu0 0
    %545 = vmatprep.mubr.bf16.mxu0 0
    %546 = vmatmul.mubr.bf16.gmra.mrb[0].mxu0 %v511
    %v547 = vpop.f32.mrb[0].mxu0
    %v548 = vadd.f32 %v498, %v547
    %v549 = vpop.f32.mrb[0].mxu0
    %v550 = vpop.f32.mrb[0].mxu0
    %v551 = vadd.f32 %v501, %v550
    %v552 = vpop.f32.mrb[0].mxu0
    %553 = vdwg.mxu0
    %554 = vst.msk [vmem:[#allocation5] sm:$0xff] %vm62, %v548
    %vm555 = vcmask 253952
    %556 = vst.msk [vmem:[#allocation5 + $0x8] sm:$0x1] %vm555, %v551
    %vm557 = vsmask.f32 3328
    %v558 = vshrl.u32 %v194, 16
    %v560 = vrot.slane %v558, 4
    %v561 = vshll.u32 %v194, 16
    %v563 = vrot.slane %v561, 5
    %v564 = vor.u32 %v560, %v563
    %v566 = vshrl.u32 %v195, 16
    %v568 = vrot.slane %v566, 4
    %v569 = vshll.u32 %v195, 16
    %v571 = vrot.slane %v569, 5
    %v572 = vor.u32 %v568, %v571
    %v573 = vsel %vm557, %v564, %v572
    %574 = vrot.lane.b32.xlu0 %v573, 96
    %v575 = vpop.permute.xlu0 %574
    %v577 = vsel %vm203, %v573, 0
    %v580 = vsel %vm203, %v575, 0
    %582 = vmatprep.subr.bf16.mxu0 0
    %583 = vmatpush1.bf16.xpose.msra.mxu0 %v580
    %584 = vmatprep.subr.bf16.mxu0 0
    %585 = vmatpush1.bf16.xpose.msra.mxu0 0
    %586 = vmatprep.subr.bf16.mxu0 0
    %587 = vmatpush1.bf16.xpose.msra.mxu0 0
    %588 = vmatprep.subr.bf16.mxu0 0
    %589 = vmatpush1.bf16.xpose.msra.mxu0 0
    %590 = vmatprep.subr.bf16.mxu0 0
    %591 = vmatpush1.bf16.xpose.msra.mxu0 0
    %592 = vmatprep.subr.bf16.mxu0 0
    %593 = vmatpush1.bf16.xpose.msra.mxu0 0
    %594 = vmatprep.subr.bf16.mxu0 0
    %595 = vmatpush1.bf16.xpose.msra.mxu0 0
    %596 = vmatprep.subr.bf16.mxu0 0
    %597 = vmatpush1.bf16.xpose.msra.mxu0 0
    %598 = vmatprep.subr.bf16.mxu0 0
    %599 = vmatpush1.bf16.xpose.msra.mxu0 0
    %600 = vmatprep.subr.bf16.mxu0 0
    %601 = vmatpush1.bf16.xpose.msra.mxu0 0
    %602 = vmatprep.subr.bf16.mxu0 0
    %603 = vmatpush1.bf16.xpose.msra.mxu0 0
    %604 = vmatprep.subr.bf16.mxu0 0
    %605 = vmatpush1.bf16.xpose.msra.mxu0 0
    %606 = vmatprep.subr.bf16.mxu0 0
    %607 = vmatpush1.bf16.xpose.msra.mxu0 0
    %608 = vmatprep.subr.bf16.mxu0 0
    %609 = vmatpush1.bf16.xpose.msra.mxu0 0
    %610 = vmatprep.subr.bf16.mxu0 0
    %611 = vmatpush1.bf16.xpose.msra.mxu0 0
    %612 = vmatprep.subr.bf16.mxu0 0
    %613 = vmatpush1.bf16.xpose.msra.mxu0 0
    %614 = vmatprep.mubr.bf16.mxu0 0
    %615 = vmatmul.mubr.bf16.gmra.mrb[0].mxu0 %v577
    %v616 = vpop.f32.mrb[0].mxu0
    %v617 = vadd.f32 0.0, %v616
    %v618 = vpop.f32.mrb[0].mxu0
    %v619 = vpop.f32.mrb[0].mxu0
    %v620 = vadd.f32 0.0, %v619
    %v621 = vpop.f32.mrb[0].mxu0
    %622 = vdwg.mxu0
    %v623 = vsel %vm251, %v617, -inf
    %624 = vmax.xlane.f32.xlu0 %v623
    %v625 = vpop.xlane.xlu0 %624
    %v626 = vsel %vm255, %v620, -inf
    %627 = vmax.xlane.f32.xlu0 %v626
    %v628 = vpop.xlane.xlu0 %627
    %v629 = vsub.f32 %v617, %v625
    %v630 = vsub.f32 %v620, %v628
    %v631 = vmul.f32 %v629, 1.442695
    %v632 = vpow.pop %v631
    %v633 = vmul.f32 %v630, 1.442695
    %v634 = vpow.pop %v633
    %v635 = vsel %vm251, %v632, 0.0
    %636 = vadd.xlane.f32.xlu0 %v635
    %v637 = vpop.xlane.xlu0 %636
    %v638 = vsel %vm255, %v634, 0.0
    %639 = vadd.xlane.f32.xlu0 %v638
    %v640 = vpop.xlane.xlu0 %639
    %v641 = vrcp.pop %v637
    %v642 = vmul.f32 %v632, %v641
    %v643 = vrcp.pop %v640
    %v644 = vmul.f32 %v634, %v643
    %v645 = vpack.c.bf16 %v644, %v642
    %646 = vrot.lane.b32.xlu0 %v573, 64
    %v647 = vpop.permute.xlu0 %646
    %v649 = vsel %vm251, %v645, 0
    %v652 = vand.u32 %v647, %v284
    %654 = vmatprep.subr.bf16.mxu0 0
    %655 = vmatpush1.bf16.msra.mxu0 %v652
    %656 = vmatprep.subr.bf16.mxu0 0
    %657 = vmatpush1.bf16.msra.mxu0 0
    %658 = vmatprep.subr.bf16.mxu0 0
    %659 = vmatpush1.bf16.msra.mxu0 0
    %660 = vmatprep.subr.bf16.mxu0 0
    %661 = vmatpush1.bf16.msra.mxu0 0
    %662 = vmatprep.subr.bf16.mxu0 0
    %663 = vmatpush1.bf16.msra.mxu0 0
    %664 = vmatprep.subr.bf16.mxu0 0
    %665 = vmatpush1.bf16.msra.mxu0 0
    %666 = vmatprep.subr.bf16.mxu0 0
    %667 = vmatpush1.bf16.msra.mxu0 0
    %668 = vmatprep.subr.bf16.mxu0 0
    %669 = vmatpush1.bf16.msra.mxu0 0
    %670 = vmatprep.subr.bf16.mxu0 0
    %671 = vmatpush1.bf16.msra.mxu0 0
    %672 = vmatprep.subr.bf16.mxu0 0
    %673 = vmatpush1.bf16.msra.mxu0 0
    %674 = vmatprep.subr.bf16.mxu0 0
    %675 = vmatpush1.bf16.msra.mxu0 0
    %676 = vmatprep.subr.bf16.mxu0 0
    %677 = vmatpush1.bf16.msra.mxu0 0
    %678 = vmatprep.subr.bf16.mxu0 0
    %679 = vmatpush1.bf16.msra.mxu0 0
    %680 = vmatprep.subr.bf16.mxu0 0
    %681 = vmatpush1.bf16.msra.mxu0 0
    %682 = vmatprep.subr.bf16.mxu0 0
    %683 = vmatpush1.bf16.msra.mxu0 0
    %684 = vmatprep.subr.bf16.mxu0 0
    %685 = vmatpush1.bf16.msra.mxu0 0
    %686 = vmatprep.mubr.bf16.mxu0 0
    %687 = vmatmul.mubr.bf16.gmra.mrb[0].mxu0 %v649
    %v688 = vpop.f32.mrb[0].mxu0
    %v689 = vadd.f32 0.0, %v688
    %v690 = vpop.f32.mrb[0].mxu0
    %v691 = vpop.f32.mrb[0].mxu0
    %v692 = vadd.f32 0.0, %v691
    %v693 = vpop.f32.mrb[0].mxu0
    %694 = vdwg.mxu0
    %v695 = vpack.c.bf16 %v692, %v689
    %696 = vrot.lane.b32.xlu0 %v573, 112
    %v697 = vpop.permute.xlu0 %696
    %698 = vrot.lane.b32.xlu0 %v573, 80
    %v699 = vpop.permute.xlu0 %698
    %v701 = vsel %vm203, %v697, 0
    %v704 = vsel %vm203, %v699, 0
    %706 = vmatprep.subr.bf16.mxu0 0
    %707 = vmatpush1.bf16.xpose.msra.mxu0 %v704
    %708 = vmatprep.subr.bf16.mxu0 0
    %709 = vmatpush1.bf16.xpose.msra.mxu0 0
    %710 = vmatprep.subr.bf16.mxu0 0
    %711 = vmatpush1.bf16.xpose.msra.mxu0 0
    %712 = vmatprep.subr.bf16.mxu0 0
    %713 = vmatpush1.bf16.xpose.msra.mxu0 0
    %714 = vmatprep.subr.bf16.mxu0 0
    %715 = vmatpush1.bf16.xpose.msra.mxu0 0
    %716 = vmatprep.subr.bf16.mxu0 0
    %717 = vmatpush1.bf16.xpose.msra.mxu0 0
    %718 = vmatprep.subr.bf16.mxu0 0
    %719 = vmatpush1.bf16.xpose.msra.mxu0 0
    %720 = vmatprep.subr.bf16.mxu0 0
    %721 = vmatpush1.bf16.xpose.msra.mxu0 0
    %722 = vmatprep.subr.bf16.mxu0 0
    %723 = vmatpush1.bf16.xpose.msra.mxu0 0
    %724 = vmatprep.subr.bf16.mxu0 0
    %725 = vmatpush1.bf16.xpose.msra.mxu0 0
    %726 = vmatprep.subr.bf16.mxu0 0
    %727 = vmatpush1.bf16.xpose.msra.mxu0 0
    %728 = vmatprep.subr.bf16.mxu0 0
    %729 = vmatpush1.bf16.xpose.msra.mxu0 0
    %730 = vmatprep.subr.bf16.mxu0 0
    %731 = vmatpush1.bf16.xpose.msra.mxu0 0
    %732 = vmatprep.subr.bf16.mxu0 0
    %733 = vmatpush1.bf16.xpose.msra.mxu0 0
    %734 = vmatprep.subr.bf16.mxu0 0
    %735 = vmatpush1.bf16.xpose.msra.mxu0 0
    %736 = vmatprep.subr.bf16.mxu0 0
    %737 = vmatpush1.bf16.xpose.msra.mxu0 0
    %738 = vmatprep.mubr.bf16.mxu0 0
    %739 = vmatmul.mubr.bf16.gmra.mrb[0].mxu0 %v701
    %v740 = vpop.f32.mrb[0].mxu0
    %v741 = vadd.f32 0.0, %v740
    %v742 = vpop.f32.mrb[0].mxu0
    %v743 = vpop.f32.mrb[0].mxu0
    %v744 = vadd.f32 0.0, %v743
    %v745 = vpop.f32.mrb[0].mxu0
    %746 = vdwg.mxu0
    %v747 = vsel %vm251, %v741, -inf
    %748 = vmax.xlane.f32.xlu0 %v747
    %v749 = vpop.xlane.xlu0 %748
    %v750 = vsel %vm255, %v744, -inf
    %751 = vmax.xlane.f32.xlu0 %v750
    %v752 = vpop.xlane.xlu0 %751
    %v753 = vsub.f32 %v741, %v749
    %v754 = vsub.f32 %v744, %v752
    %v755 = vmul.f32 %v753, 1.442695
    %v756 = vpow.pop %v755
    %v757 = vmul.f32 %v754, 1.442695
    %v758 = vpow.pop %v757
    %v759 = vsel %vm251, %v756, 0.0
    %760 = vadd.xlane.f32.xlu0 %v759
    %v761 = vpop.xlane.xlu0 %760
    %v762 = vsel %vm255, %v758, 0.0
    %763 = vadd.xlane.f32.xlu0 %v762
    %v764 = vpop.xlane.xlu0 %763
    %v765 = vrcp.pop %v761
    %v766 = vmul.f32 %v756, %v765
    %v767 = vrcp.pop %v764
    %v768 = vmul.f32 %v758, %v767
    %v769 = vpack.c.bf16 %v768, %v766
    %770 = vrot.lane.b32.xlu0 %v573, 48
    %v771 = vpop.permute.xlu0 %770
    %v773 = vsel %vm251, %v769, 0
    %v776 = vand.u32 %v771, %v284
    %778 = vmatprep.subr.bf16.mxu0 0
    %779 = vmatpush1.bf16.msra.mxu0 %v776
    %780 = vmatprep.subr.bf16.mxu0 0
    %781 = vmatpush1.bf16.msra.mxu0 0
    %782 = vmatprep.subr.bf16.mxu0 0
    %783 = vmatpush1.bf16.msra.mxu0 0
    %784 = vmatprep.subr.bf16.mxu0 0
    %785 = vmatpush1.bf16.msra.mxu0 0
    %786 = vmatprep.subr.bf16.mxu0 0
    %787 = vmatpush1.bf16.msra.mxu0 0
    %788 = vmatprep.subr.bf16.mxu0 0
    %789 = vmatpush1.bf16.msra.mxu0 0
    %790 = vmatprep.subr.bf16.mxu0 0
    %791 = vmatpush1.bf16.msra.mxu0 0
    %792 = vmatprep.subr.bf16.mxu0 0
    %793 = vmatpush1.bf16.msra.mxu0 0
    %794 = vmatprep.subr.bf16.mxu0 0
    %795 = vmatpush1.bf16.msra.mxu0 0
    %796 = vmatprep.subr.bf16.mxu0 0
    %797 = vmatpush1.bf16.msra.mxu0 0
    %798 = vmatprep.subr.bf16.mxu0 0
    %799 = vmatpush1.bf16.msra.mxu0 0
    %800 = vmatprep.subr.bf16.mxu0 0
    %801 = vmatpush1.bf16.msra.mxu0 0
    %802 = vmatprep.subr.bf16.mxu0 0
    %803 = vmatpush1.bf16.msra.mxu0 0
    %804 = vmatprep.subr.bf16.mxu0 0
    %805 = vmatpush1.bf16.msra.mxu0 0
    %806 = vmatprep.subr.bf16.mxu0 0
    %807 = vmatpush1.bf16.msra.mxu0 0
    %808 = vmatprep.subr.bf16.mxu0 0
    %809 = vmatpush1.bf16.msra.mxu0 0
    %810 = vmatprep.mubr.bf16.mxu0 0
    %811 = vmatmul.mubr.bf16.gmra.mrb[0].mxu0 %v773
    %v812 = vpop.f32.mrb[0].mxu0
    %v813 = vadd.f32 0.0, %v812
    %v814 = vpop.f32.mrb[0].mxu0
    %v815 = vpop.f32.mrb[0].mxu0
    %v816 = vadd.f32 0.0, %v815
    %v817 = vpop.f32.mrb[0].mxu0
    %818 = vdwg.mxu0
    %v819 = vpack.c.bf16 %v816, %v813
    %v821 = vsel %vm203, %v819, 0
    %823 = vmatprep.subr.bf16.mxu0 0
    %824 = vmatpush1.bf16.msra.mxu0 %v458
    %825 = vmatprep.subr.bf16.mxu0 0
    %826 = vmatpush1.bf16.msra.mxu0 0
    %827 = vmatprep.subr.bf16.mxu0 0
    %828 = vmatpush1.bf16.msra.mxu0 0
    %829 = vmatprep.subr.bf16.mxu0 0
    %830 = vmatpush1.bf16.msra.mxu0 0
    %831 = vmatprep.subr.bf16.mxu0 0
    %832 = vmatpush1.bf16.msra.mxu0 0
    %833 = vmatprep.subr.bf16.mxu0 0
    %834 = vmatpush1.bf16.msra.mxu0 0
    %835 = vmatprep.subr.bf16.mxu0 0
    %836 = vmatpush1.bf16.msra.mxu0 0
    %837 = vmatprep.subr.bf16.mxu0 0
    %838 = vmatpush1.bf16.msra.mxu0 0
    %839 = vmatprep.subr.bf16.mxu0 0
    %840 = vmatpush1.bf16.msra.mxu0 0
    %841 = vmatprep.subr.bf16.mxu0 0
    %842 = vmatpush1.bf16.msra.mxu0 0
    %843 = vmatprep.subr.bf16.mxu0 0
    %844 = vmatpush1.bf16.msra.mxu0 0
    %845 = vmatprep.subr.bf16.mxu0 0
    %846 = vmatpush1.bf16.msra.mxu0 0
    %847 = vmatprep.subr.bf16.mxu0 0
    %848 = vmatpush1.bf16.msra.mxu0 0
    %849 = vmatprep.subr.bf16.mxu0 0
    %850 = vmatpush1.bf16.msra.mxu0 0
    %851 = vmatprep.subr.bf16.mxu0 0
    %852 = vmatpush1.bf16.msra.mxu0 0
    %853 = vmatprep.subr.bf16.mxu0 0
    %854 = vmatpush1.bf16.msra.mxu0 0
    %855 = vmatprep.mubr.bf16.mxu0 0
    %856 = vmatmul.mubr.bf16.gmra.mrb[0].mxu0 %v821
    %v857 = vpop.f32.mrb[0].mxu0
    %v858 = vadd.f32 0.0, %v857
    %v859 = vpop.f32.mrb[0].mxu0
    %v860 = vpop.f32.mrb[0].mxu0
    %v861 = vadd.f32 0.0, %v860
    %v862 = vpop.f32.mrb[0].mxu0
    %863 = vdwg.mxu0
    %v865 = vsel %vm203, %v695, 0
    %867 = vmatprep.subr.bf16.mxu0 0
    %868 = vmatpush1.bf16.msra.mxu0 %v508
    %869 = vmatprep.subr.bf16.mxu0 0
    %870 = vmatpush1.bf16.msra.mxu0 0
    %871 = vmatprep.subr.bf16.mxu0 0
    %872 = vmatpush1.bf16.msra.mxu0 0
    %873 = vmatprep.subr.bf16.mxu0 0
    %874 = vmatpush1.bf16.msra.mxu0 0
    %875 = vmatprep.subr.bf16.mxu0 0
    %876 = vmatpush1.bf16.msra.mxu0 0
    %877 = vmatprep.subr.bf16.mxu0 0
    %878 = vmatpush1.bf16.msra.mxu0 0
    %879 = vmatprep.subr.bf16.mxu0 0
    %880 = vmatpush1.bf16.msra.mxu0 0
    %881 = vmatprep.subr.bf16.mxu0 0
    %882 = vmatpush1.bf16.msra.mxu0 0
    %883 = vmatprep.subr.bf16.mxu0 0
    %884 = vmatpush1.bf16.msra.mxu0 0
    %885 = vmatprep.subr.bf16.mxu0 0
    %886 = vmatpush1.bf16.msra.mxu0 0
    %887 = vmatprep.subr.bf16.mxu0 0
    %888 = vmatpush1.bf16.msra.mxu0 0
    %889 = vmatprep.subr.bf16.mxu0 0
    %890 = vmatpush1.bf16.msra.mxu0 0
    %891 = vmatprep.subr.bf16.mxu0 0
    %892 = vmatpush1.bf16.msra.mxu0 0
    %893 = vmatprep.subr.bf16.mxu0 0
    %894 = vmatpush1.bf16.msra.mxu0 0
    %895 = vmatprep.subr.bf16.mxu0 0
    %896 = vmatpush1.bf16.msra.mxu0 0
    %897 = vmatprep.subr.bf16.mxu0 0
    %898 = vmatpush1.bf16.msra.mxu0 0
    %899 = vmatprep.mubr.bf16.mxu0 0
    %900 = vmatmul.mubr.bf16.gmra.mrb[0].mxu0 %v865
    %v901 = vpop.f32.mrb[0].mxu0
    %v902 = vadd.f32 %v858, %v901
    %v903 = vpop.f32.mrb[0].mxu0
    %v904 = vpop.f32.mrb[0].mxu0
    %v905 = vadd.f32 %v861, %v904
    %v906 = vpop.f32.mrb[0].mxu0
    %907 = vdwg.mxu0
    %908 = vst.msk [vmem:[#allocation5 + $0x9] sm:$0xff] %vm62, %v902
    %909 = vst.msk [vmem:[#allocation5 + $0x11] sm:$0x1] %vm555, %v905
    %v910 = vld [vmem:[#allocation5] sm:$0xff]
    %v911 = vld [vmem:[#allocation5 + $0x8] sm:$0xff]
    %v912 = vld [vmem:[#allocation5 + $0x10] sm:$0x3]
    %v913 = vld [vmem:[%s5] sm:$0x1]
    %v915 = vlaneseq
    %v916 = vshrl.u32 %v915, 7
    %v917 = vsub.s32 0, %v916
    %v918 = vrot.slane %v913, %v917
    %v920 = vadd.f32 %v910, %v918
    %v921 = vadd.f32 %v911, %v918
    %v922 = vadd.f32 %v912, %v918
    %v923 = vadd.f32 %v920, %v57
    %v924 = vadd.f32 %v921, %v58
    %v925 = vadd.f32 %v922, %v59
    %v926 = vld [vmem:[%s6] sm:$0x1]
    %v927 = vld [vmem:[%s7] sm:$0x1]
    %v928 = vsel %vm62, %v923, 0.0
    %929 = vadd.xlane.f32.xlu0 %v928
    %v930 = vpop.xlane.xlu0 %929
    %v931 = vsel %vm62, %v924, 0.0
    %932 = vadd.xlane.f32.xlu0 %v931
    %v933 = vpop.xlane.xlu0 %932
    %v934 = vsel %vm69, %v925, 0.0
    %935 = vadd.xlane.f32.xlu0 %v934
    %v936 = vpop.xlane.xlu0 %935
    %v937 = vmul.f32 %v930, %v73
    %v938 = vmul.f32 %v933, %v73
    %v939 = vmul.f32 %v936, %v73
    %v940 = vsub.f32 %v923, %v937
    %v941 = vsub.f32 %v924, %v938
    %v942 = vsub.f32 %v925, %v939
    %v943 = vmul.f32 %v940, %v940
    %v944 = vmul.f32 %v941, %v941
    %v945 = vmul.f32 %v942, %v942
    %v946 = vsel %vm62, %v943, 0.0
    %947 = vadd.xlane.f32.xlu0 %v946
    %v948 = vpop.xlane.xlu0 %947
    %v949 = vsel %vm62, %v944, 0.0
    %950 = vadd.xlane.f32.xlu0 %v949
    %v951 = vpop.xlane.xlu0 %950
    %v952 = vsel %vm69, %v945, 0.0
    %953 = vadd.xlane.f32.xlu0 %v952
    %v954 = vpop.xlane.xlu0 %953
    %v955 = vmul.f32 %v948, %v73
    %v956 = vmul.f32 %v951, %v73
    %v957 = vmul.f32 %v954, %v73
    %v958 = vadd.f32 %v955, 1e-05
    %v959 = vadd.f32 %v956, 1e-05
    %v960 = vadd.f32 %v957, 1e-05
    %v961 = vrsqrt.pop %v958
    %v962 = vrsqrt.pop %v959
    %v963 = vrsqrt.pop %v960
    %v964 = vmul.f32 %v940, %v961
    %v965 = vmul.f32 %v941, %v962
    %v966 = vmul.f32 %v942, %v963
    %v968 = vlaneseq
    %v969 = vshrl.u32 %v968, 7
    %v970 = vsub.s32 0, %v969
    %v971 = vrot.slane %v926, %v970
    %v973 = vmul.f32 %v964, %v971
    %v974 = vmul.f32 %v965, %v971
    %v975 = vmul.f32 %v966, %v971
    %v977 = vlaneseq
    %v978 = vshrl.u32 %v977, 7
    %v979 = vsub.s32 0, %v978
    %v980 = vrot.slane %v927, %v979
    %v982 = vadd.f32 %v973, %v980
    %v983 = vadd.f32 %v974, %v980
    %v984 = vadd.f32 %v975, %v980
    %v985 = vpack.c.bf16 %v983, %v982
    %v986 = vpack.c.bf16 %v984, %v984
    %v987 = vld [vmem:[#allocation2] sm:$0xf]
    %v988 = vld [vmem:[#allocation2 + $0x4] sm:$0xf]
    %v989 = vld [vmem:[#allocation2 + $0x8] sm:$0xf]
    %v990 = vld [vmem:[#allocation2 + $0xc] sm:$0xf]
    %v991 = vld [vmem:[%s9] sm:$0x1]
    %v993 = vlaneseq
    %v994 = vshrl.u32 %v993, 7
    %v995 = vsub.s32 0, %v994
    %v996 = vrot.slane %v991, %v995
    %v1002 = vunpack.c.l.b16 %v987
    %v1003 = vunpack.c.l.b16 %v988
    %v1004 = vunpack.c.l.b16 %v989
    %v1005 = vunpack.c.l.b16 %v990
    %v1006 = vpack.c.b16 %v1003, %v1002
    %v1007 = vpack.c.b16 %v1005, %v1004
    %v1011 = vsel %vm62, %v985, 0
    %v1014 = vsel %vm62, %v986, 0
    %1016 = vmatprep.subr.bf16.mxu0 0
    %1017 = vmatpush1.bf16.msra.mxu0 %v1006
    %1018 = vmatprep.subr.bf16.mxu0 0
    %1019 = vmatpush1.bf16.msra.mxu0 %v1007
    %1020 = vmatprep.subr.bf16.mxu0 0
    %1021 = vmatpush1.bf16.msra.mxu0 0
    %1022 = vmatprep.subr.bf16.mxu0 0
    %1023 = vmatpush1.bf16.msra.mxu0 0
    %1024 = vmatprep.subr.bf16.mxu0 0
    %1025 = vmatpush1.bf16.msra.mxu0 0
    %1026 = vmatprep.subr.bf16.mxu0 0
    %1027 = vmatpush1.bf16.msra.mxu0 0
    %1028 = vmatprep.subr.bf16.mxu0 0
    %1029 = vmatpush1.bf16.msra.mxu0 0
    %1030 = vmatprep.subr.bf16.mxu0 0
    %1031 = vmatpush1.bf16.msra.mxu0 0
    %1032 = vmatprep.subr.bf16.mxu0 0
    %1033 = vmatpush1.bf16.msra.mxu0 0
    %1034 = vmatprep.subr.bf16.mxu0 0
    %1035 = vmatpush1.bf16.msra.mxu0 0
    %1036 = vmatprep.subr.bf16.mxu0 0
    %1037 = vmatpush1.bf16.msra.mxu0 0
    %1038 = vmatprep.subr.bf16.mxu0 0
    %1039 = vmatpush1.bf16.msra.mxu0 0
    %1040 = vmatprep.subr.bf16.mxu0 0
    %1041 = vmatpush1.bf16.msra.mxu0 0
    %1042 = vmatprep.subr.bf16.mxu0 0
    %1043 = vmatpush1.bf16.msra.mxu0 0
    %1044 = vmatprep.subr.bf16.mxu0 0
    %1045 = vmatpush1.bf16.msra.mxu0 0
    %1046 = vmatprep.subr.bf16.mxu0 0
    %1047 = vmatpush1.bf16.msra.mxu0 0
    %1048 = vmatprep.mubr.bf16.mxu0 0
    %1049 = vmatmul.mubr.bf16.gmra.mrb[0].mxu0 %v1011
    %v1050 = vpop.f32.mrb[0].mxu0
    %v1051 = vadd.f32 %v996, %v1050
    %v1052 = vpop.f32.mrb[0].mxu0
    %v1053 = vpop.f32.mrb[0].mxu0
    %v1054 = vadd.f32 %v996, %v1053
    %v1055 = vpop.f32.mrb[0].mxu0
    %1056 = vmatprep.mubr.bf16.mxu0 0
    %1057 = vmatmul.mubr.bf16.gmra.mrb[0].mxu0 %v1014
    %v1058 = vpop.f32.mrb[0].mxu0
    %v1059 = vadd.f32 %v996, %v1058
    %v1060 = vpop.f32.mrb[0].mxu0
    %v1061 = vpop.f32.mrb[0].mxu0
    %v1062 = vpop.f32.mrb[0].mxu0
    %1063 = vdwg.mxu0
    %v1064 = vmul.f32 %v1051, 0.5
    %v1065 = vmul.f32 %v1054, 0.5
    %v1066 = vmul.f32 %v1059, 0.5
    %v1067 = vmul.f32 %v1051, 0.70710677
    %v1068 = vmul.f32 %v1054, 0.70710677
    %v1069 = vmul.f32 %v1059, 0.70710677
    %v1070 = verf.f32.pop %v1067
    %v1071 = verf.f32.pop %v1068
    %v1072 = verf.f32.pop %v1069
    %v1073 = vadd.f32 %v1070, 1.0
    %v1074 = vadd.f32 %v1071, 1.0
    %v1075 = vadd.f32 %v1072, 1.0
    %v1076 = vmul.f32 %v1064, %v1073
    %v1077 = vmul.f32 %v1065, %v1074
    %v1078 = vmul.f32 %v1066, %v1075
    %v1079 = vpack.c.bf16 %v1077, %v1076
    %v1080 = vpack.c.bf16 %v1078, %v1078
    %v1081 = vld [vmem:[%s10] sm:$0xf]
    %v1082 = vld [vmem:[%s10 + $0x4] sm:$0xf]
    %v1083 = vld [vmem:[%s10 + $0x8] sm:$0xf]
    %v1084 = vld [vmem:[%s10 + $0xc] sm:$0xf]
    %v1085 = vld [vmem:[%s10 + $0x10] sm:$0xf]
    %v1086 = vld [vmem:[%s10 + $0x14] sm:$0xf]
    %v1087 = vld [vmem:[%s10 + $0x18] sm:$0xf]
    %v1088 = vld [vmem:[%s10 + $0x1c] sm:$0xf]
    %v1089 = vld [vmem:[%s11] sm:$0x1]
    %v1091 = vlaneseq
    %v1092 = vshrl.u32 %v1091, 7
    %v1093 = vsub.s32 0, %v1092
    %v1094 = vrot.slane %v1089, %v1093
    %v1104 = vunpack.c.l.b16 %v1081
    %v1105 = vunpack.c.l.b16 %v1082
    %v1106 = vunpack.c.l.b16 %v1083
    %v1107 = vunpack.c.l.b16 %v1084
    %v1108 = vunpack.c.l.b16 %v1085
    %v1109 = vunpack.c.l.b16 %v1086
    %v1110 = vunpack.c.l.b16 %v1087
    %v1111 = vunpack.c.l.b16 %v1088
    %v1112 = vpack.c.b16 %v1105, %v1104
    %v1113 = vpack.c.b16 %v1107, %v1106
    %v1114 = vpack.c.b16 %v1109, %v1108
    %v1115 = vpack.c.b16 %v1111, %v1110
    %vm1120 = vcmask 523264
    %v1122 = vsel %vm1120, %v1079, 0
    %v1125 = vsel %vm1120, %v1080, 0
    %1127 = vmatprep.subr.bf16.mxu0 0
    %1128 = vmatpush1.bf16.msra.mxu0 %v1112
    %1129 = vmatprep.subr.bf16.mxu0 0
    %1130 = vmatpush1.bf16.msra.mxu0 %v1113
    %1131 = vmatprep.subr.bf16.mxu0 0
    %1132 = vmatpush1.bf16.msra.mxu0 %v1114
    %1133 = vmatprep.subr.bf16.mxu0 0
    %1134 = vmatpush1.bf16.msra.mxu0 %v1115
    %1135 = vmatprep.subr.bf16.mxu0 0
    %1136 = vmatpush1.bf16.msra.mxu0 0
    %1137 = vmatprep.subr.bf16.mxu0 0
    %1138 = vmatpush1.bf16.msra.mxu0 0
    %1139 = vmatprep.subr.bf16.mxu0 0
    %1140 = vmatpush1.bf16.msra.mxu0 0
    %1141 = vmatprep.subr.bf16.mxu0 0
    %1142 = vmatpush1.bf16.msra.mxu0 0
    %1143 = vmatprep.subr.bf16.mxu0 0
    %1144 = vmatpush1.bf16.msra.mxu0 0
    %1145 = vmatprep.subr.bf16.mxu0 0
    %1146 = vmatpush1.bf16.msra.mxu0 0
    %1147 = vmatprep.subr.bf16.mxu0 0
    %1148 = vmatpush1.bf16.msra.mxu0 0
    %1149 = vmatprep.subr.bf16.mxu0 0
    %1150 = vmatpush1.bf16.msra.mxu0 0
    %1151 = vmatprep.subr.bf16.mxu0 0
    %1152 = vmatpush1.bf16.msra.mxu0 0
    %1153 = vmatprep.subr.bf16.mxu0 0
    %1154 = vmatpush1.bf16.msra.mxu0 0
    %1155 = vmatprep.subr.bf16.mxu0 0
    %1156 = vmatpush1.bf16.msra.mxu0 0
    %1157 = vmatprep.subr.bf16.mxu0 0
    %1158 = vmatpush1.bf16.msra.mxu0 0
    %1159 = vmatprep.mubr.bf16.mxu0 0
    %1160 = vmatmul.mubr.bf16.gmra.mrb[0].mxu0 %v1122
    %v1161 = vpop.f32.mrb[0].mxu0
    %v1162 = vadd.f32 %v1094, %v1161
    %v1163 = vpop.f32.mrb[0].mxu0
    %v1164 = vpop.f32.mrb[0].mxu0
    %v1165 = vadd.f32 %v1094, %v1164
    %v1166 = vpop.f32.mrb[0].mxu0
    %1167 = vmatprep.mubr.bf16.mxu0 0
    %1168 = vmatmul.mubr.bf16.gmra.mrb[0].mxu0 %v1125
    %v1169 = vpop.f32.mrb[0].mxu0
    %v1170 = vadd.f32 %v1094, %v1169
    %v1171 = vpop.f32.mrb[0].mxu0
    %v1172 = vpop.f32.mrb[0].mxu0
    %v1173 = vpop.f32.mrb[0].mxu0
    %1174 = vdwg.mxu0
    %v1175 = vadd.f32 %v1162, %v923
    %v1176 = vadd.f32 %v1165, %v924
    %v1177 = vadd.f32 %v1170, %v925
    %v1178 = vadd.f32 %v1175, %v57
    %v1179 = vadd.f32 %v1176, %v58
    %v1180 = vadd.f32 %v1177, %v59
    %1181 = vst.msk [vmem:[#allocation5] sm:$0xff] %vm62, %v1178
    %1182 = vst.msk [vmem:[#allocation5 + $0x8] sm:$0xff] %vm62, %v1179
    %1183 = vst.msk [vmem:[#allocation5 + $0x10] sm:$0x3] %vm69, %v1180
    // Predicated region
    $region54: #{tpu_custom_call.1} parent=1 // pred_check
      _
    $region55: #{tpu_custom_call.1} parent=1 // pred_check_branch
      %1185 = sbr.rel (0) target = $region57
    $region56: #{tpu_custom_call.1} parent=1 // pred_region
      %s1187 = ssub.s32 384, 384
      %1188 = vsyncadd [#allocation4], %s1187
      %s1189 = sshll.u32 [#allocation5], 4
      %s1190 = int_to_ptr.vmem [resolvable:$true] %s1189
      %1195 = dma.vmem_to_hbm [thread:$0]  %s1190, 384, %s12, [#allocation4], 128, 128, 8
    $region57: #{tpu_custom_call.1} parent=1 // pred_fallthru
      _
    // Predicated region
    $region58: #{tpu_custom_call.1} parent=1 // pred_check
      _
    $region59: #{tpu_custom_call.1} parent=1 // pred_check_branch
      %1197 = sbr.rel (0) target = $region61
    $region60: #{tpu_custom_call.1} parent=1 // pred_region
      %1198 = dma.done [#allocation4], 384
    $region61: #{tpu_custom_call.1} parent=1 // pred_fallthru
      _
    %1199 = vsyncpa [#allocation3], 1
    %1200 = vsyncpa [#allocation4], 1

</llo_original>
